<compile_context>
chip_gen: v5e
topology: v5e:2x2
jax: 0.10.0
libtpu: 0.0.40
codegen_flags: <defaults>
</compile_context>

<pallas_src>
import functools

import jax
import jax.numpy as jnp
from jax.experimental import pallas as pl
from jax.experimental.pallas import tpu as pltpu

C_IN = 3          # RGB channels (as in the PyTorch module)
C_PAD = 8         # channel dim zero-padded to 8 in HBM (K alignment, dense DMA)
C_FEAT = 512      # backbone feature channels (ResNet34 output)
C_EMB = 64        # self.conv = nn.Conv2d(512, 64, 1)
OUT_LANES = 128   # lane-dense output row width

# Cap on the per-step [2*tile_b*tile_p, 512] f32 stem chunk (dominant VMEM user).
_FEAT_CHUNK_BYTES = 16 * 1024 * 1024
# Scoped VMEM limit that is valid on v5e/v6e (128 MiB) and v7x (64 MiB/TC).
_VMEM_LIMIT_BYTES = 48 * 1024 * 1024


def embedding_tile_kernel(x_ref, w_stem_ref, b_stem_ref, w_conv_ref, b_conv_ref,
                          w_lin_ref, b_lin_ref, o_ref, acc_ref, *, inv_p):
    """Grid = (batch_tiles, p_tiles); the P axis is the (last, 'arbitrary') reduction axis.

    x_ref      : [2, tile_b, tile_p, 8] bf16  (curr, ctx) stacked, channels pre-padded
    w_stem_ref : [8, 512]   bf16  synthetic stem weight (rows 3..7 zero)
    b_stem_ref : [1, 512]   f32
    w_conv_ref : [512, 64]  bf16  nn.Conv2d(512, 64, 1) as matmul
    b_conv_ref : [1, 64]    f32
    w_lin_ref  : [1] f32 (SMEM);  b_lin_ref : [1] f32 (SMEM)   nn.Linear(1, 1)
    o_ref      : [1, tile_b, 128] f32  lane-dense output slab (result in lane 0)
    acc_ref    : [2*tile_b, 512]  f32  VMEM scratch: running pixel-sum of stem features
    """
    _, tb, tp, c = x_ref.shape
    p_idx = pl.program_id(1)

    @pl.when(p_idx == 0)
    def _():
        acc_ref[...] = jnp.zeros_like(acc_ref)

    # --- stem for this P tile: one [M, 8] @ [8, 512] MXU matmul (bf16 in, f32 acc),
    #     bias + ReLU fused in the same pass, partial average-pool accumulated. ---
    x = x_ref[...].reshape(2 * tb * tp, c)                       # free leading-dim merge
    feat = jnp.dot(x, w_stem_ref[...], preferred_element_type=jnp.float32)
    feat = jnp.maximum(feat + b_stem_ref[...], 0.0)              # [2*tb*tp, 512] f32
    acc_ref[...] += jnp.sum(feat.reshape(2 * tb, tp, C_FEAT), axis=1)

    # --- finalize once per batch tile ---
    @pl.when(p_idx == pl.num_programs(1) - 1)
    def _():
        pooled = acc_ref[...] * inv_p                            # global average pool
        emb = jnp.dot(pooled.astype(jnp.bfloat16), w_conv_ref[...],
                      preferred_element_type=jnp.float32) + b_conv_ref[...]  # [2*tb, 64]
        e_curr = emb[:tb]
        e_ctx = emb[tb:]
        dot = jnp.sum(e_curr * e_ctx, axis=-1, keepdims=True)    # vecdot, [tb, 1]
        res = dot * w_lin_ref[0] + b_lin_ref[0]                  # nn.Linear(1, 1)
        # lane-dense store: one full 128-lane row per batch element (value in lane 0)
        o_ref[0] = jnp.pad(res, ((0, 0), (0, o_ref.shape[-1] - 1)))


def _has_multiple_tensorcores():
    """Best-effort probe: v7x (2 TCs/chip) wants >= 2 parallel batch steps;
    single-TC parts (v5e/v6e) prefer one maximal batch tile.  Safe fallback: True."""
    try:
        kind = jax.devices()[0].device_kind.lower()
    except Exception:
        return True
    single_tc = ("v5e", "v5 lite", "v5lite", "v6e", "v6 lite", "v6lite")
    return not any(t in kind for t in single_tc)


def _pick_tile_b(batch, max_tile=8):
    divisors = [d for d in range(min(batch, max_tile), 0, -1) if batch % d == 0]
    if _has_multiple_tensorcores():
        for d in divisors:
            if batch // d >= 2:      # >= 2 parallel batch steps -> both TCs busy
                return d
    return divisors[0]               # single TC: largest tile, fewest grid steps


def _pick_tile_p(p_total, tile_b):
    """Largest P tile dividing p_total with the per-step [2*tile_b*tile_p, 512] f32
    stem chunk under _FEAT_CHUNK_BYTES.  Second-minor block dim must be a multiple
    of 8 (or the full extent)."""
    budget_rows = max(8, _FEAT_CHUNK_BYTES // (2 * tile_b * C_FEAT * 4))
    if p_total <= budget_rows:
        return p_total
    t = (budget_rows // 128) * 128
    while t >= 128:                  # prefer lane-width multiples
        if p_total % t == 0:
            return t
        t -= 128
    for t in range(min(p_total, budget_rows), 0, -1):
        if p_total % t == 0 and t % 8 == 0:
            return t
    return p_total


def init_params(key):
    ks = jax.random.split(key, 6)
    w_stem3 = 0.1 * jax.random.normal(ks[0], (C_IN, C_FEAT), jnp.float32)
    # zero-pad the weight rows (tiny array) so the in-kernel K=8 matmul is exact
    w_stem = jnp.pad(w_stem3, ((0, C_PAD - C_IN), (0, 0))).astype(jnp.bfloat16)
    b_stem = 0.01 * jax.random.normal(ks[1], (1, C_FEAT), jnp.float32)
    w_conv = ((1.0 / jnp.sqrt(C_FEAT)) *
              jax.random.normal(ks[2], (C_FEAT, C_EMB), jnp.float32)).astype(jnp.bfloat16)
    b_conv = 0.01 * jax.random.normal(ks[3], (1, C_EMB), jnp.float32)
    w_lin = jax.random.normal(ks[4], (1,), jnp.float32)
    b_lin = jax.random.normal(ks[5], (1,), jnp.float32)
    return dict(w_stem=w_stem, b_stem=b_stem, w_conv=w_conv, b_conv=b_conv,
                w_lin=w_lin, b_lin=b_lin)


def embedding_model_forward(current_img, context_img, params):
    """current_img, context_img: NCHW float32 [B, 3, H, W]  ->  output [B]."""
    B, C, H, W = current_img.shape
    P = H * W

    # NCHW f32 -> bf16, channels zero-padded 3->8 in HBM, channels-last [B, P, 8];
    # curr/ctx stacked on a leading axis so the kernel needs no concat/pad and
    # the image DMA is a contiguous stream.
    def prep(x):
        x = x.astype(jnp.bfloat16)
        x = jnp.pad(x, ((0, 0), (0, C_PAD - C), (0, 0), (0, 0)))
        return jnp.transpose(x, (0, 2, 3, 1)).reshape(B, P, C_PAD)

    x = jnp.stack([prep(current_img), prep(context_img)], axis=0)   # [2, B, P, 8]

    tile_b = _pick_tile_b(B)
    tile_p = _pick_tile_p(P, tile_b)
    num_b_tiles = B // tile_b
    num_p_tiles = P // tile_p

    n_imgs = 2 * B
    cost = pl.CostEstimate(
        flops=2 * n_imgs * P * C_PAD * C_FEAT + 2 * n_imgs * C_FEAT * C_EMB + 4 * B * C_EMB,
        transcendentals=0,
        bytes_accessed=(x.size * 2
                        + C_PAD * C_FEAT * 2 + C_FEAT * 4
                        + C_FEAT * C_EMB * 2 + C_EMB * 4 + 8
                        + num_b_tiles * tile_b * OUT_LANES * 4))

    kernel = functools.partial(embedding_tile_kernel, inv_p=float(1.0 / P))

    # TODO(synk): if xprof shows exposed DMA on the (now small) image tiles, add
    # pipeline_mode=pl.Buffered(3) on the image BlockSpec.
    out = pl.pallas_call(
        kernel,
        out_shape=jax.ShapeDtypeStruct((num_b_tiles, tile_b, OUT_LANES), jnp.float32),
        grid=(num_b_tiles, num_p_tiles),
        in_specs=[
            pl.BlockSpec((2, tile_b, tile_p, C_PAD), lambda i, j: (0, i, j, 0)),
            pl.BlockSpec((C_PAD, C_FEAT), lambda i, j: (0, 0)),
            pl.BlockSpec((1, C_FEAT), lambda i, j: (0, 0)),
            pl.BlockSpec((C_FEAT, C_EMB), lambda i, j: (0, 0)),
            pl.BlockSpec((1, C_EMB), lambda i, j: (0, 0)),
            pl.BlockSpec(memory_space=pltpu.MemorySpace.SMEM),
            pl.BlockSpec(memory_space=pltpu.MemorySpace.SMEM),
        ],
        out_specs=pl.BlockSpec((1, tile_b, OUT_LANES), lambda i, j: (i, 0, 0)),
        scratch_shapes=[pltpu.VMEM((2 * tile_b, C_FEAT), jnp.float32)],
        compiler_params=pltpu.CompilerParams(
            dimension_semantics=("parallel", "arbitrary"),
            vmem_limit_bytes=_VMEM_LIMIT_BYTES),
        cost_estimate=cost,
    )(x,
      params["w_stem"], params["b_stem"],
      params["w_conv"], params["b_conv"],
      params["w_lin"], params["b_lin"])

    return out[:, :, 0].reshape(-1)   # squeeze(-1): final output shape [B]


def ref_forward(curr_img, ctx_img, p):
    """Pure-JAX reference of the same math (synthetic backbone, same bf16 casts)."""
    B, C, H, W = curr_img.shape
    w_stem = p["w_stem"][:C]                                # [3, 512] bf16

    def embed(x):
        xb = jnp.transpose(x, (0, 2, 3, 1)).reshape(B, H * W, C).astype(jnp.bfloat16)
        feat = jax.lax.dot_general(xb, w_stem, (((2,), (0,)), ((), ())),
                                   preferred_element_type=jnp.float32)   # [B, P, 512]
        feat = jnp.maximum(feat + p["b_stem"], 0.0)
        pooled = jnp.mean(feat, axis=1)                                  # [B, 512]
        return jnp.dot(pooled.astype(jnp.bfloat16), p["w_conv"],
                       preferred_element_type=jnp.float32) + p["b_conv"]  # [B, 64]

    d = jnp.sum(embed(curr_img) * embed(ctx_img), axis=-1)   # vecdot
    return d * p["w_lin"][0] + p["b_lin"][0]                 # Linear(1,1).squeeze(-1)


if __name__ == "__main__":
    key = jax.random.PRNGKey(0)
    k_params, k_curr, k_ctx = jax.random.split(key, 3)

    params = init_params(k_params)

    B, H, W = 4, 8, 8
    current_img = jax.random.normal(k_curr, (B, C_IN, H, W), jnp.float32)
    context_img = jax.random.normal(k_ctx, (B, C_IN, H, W), jnp.float32)

    fwd = jax.jit(embedding_model_forward)
    o = jax.block_until_ready(fwd(current_img, context_img, params))

    ref = ref_forward(current_img, context_img, params)
    assert o.shape == (B,)
    assert jnp.allclose(o, ref, rtol=1e-2, atol=1e-2), (o, ref)

    print("KERNEL_OK")
</pallas_src>

<mosaic_0001>
module attributes {stable_mosaic.version = 11 : i64} {
  func.func @embedding_tile_kernel(%arg0: i32, %arg1: i32, %arg2: memref<2x2x64x8xbf16, #tpu.memory_space<vmem>>, %arg3: memref<8x512xbf16, #tpu.memory_space<vmem>>, %arg4: memref<1x512xf32, #tpu.memory_space<vmem>>, %arg5: memref<512x64xbf16, #tpu.memory_space<vmem>>, %arg6: memref<1x64xf32, #tpu.memory_space<vmem>>, %arg7: memref<1xf32, #tpu.memory_space<smem>>, %arg8: memref<1xf32, #tpu.memory_space<smem>>, %arg9: memref<1x2x128xf32, #tpu.memory_space<vmem>>, %arg10: memref<4x512xf32, #tpu.memory_space<vmem>>) attributes {dimension_semantics = [#tpu.dimension_semantics<parallel>, #tpu.dimension_semantics<arbitrary>], iteration_bounds = array<i64: 2, 1>, scalar_prefetch = 0 : i64, scratch_operands = 1 : i64, tpu.core_type = #tpu.core_type<tc>, window_params = [{transform_indices = @transform_0, window_bounds = array<i64: 2, 2, 64, 8>}, {pipeline_mode = #tpu.pipeline_mode<synchronous>, transform_indices = @transform_1, window_bounds = array<i64: 8, 512>}, {pipeline_mode = #tpu.pipeline_mode<synchronous>, transform_indices = @transform_2, window_bounds = array<i64: 1, 512>}, {pipeline_mode = #tpu.pipeline_mode<synchronous>, transform_indices = @transform_3, window_bounds = array<i64: 512, 64>}, {pipeline_mode = #tpu.pipeline_mode<synchronous>, transform_indices = @transform_4, window_bounds = array<i64: 1, 64>}, {transform_indices = @transform_5, window_bounds = array<i64: 1>}, {transform_indices = @transform_6, window_bounds = array<i64: 1>}, {transform_indices = @transform_7, window_bounds = array<i64: 1, 2, 128>}]} {
    %c0_i32 = arith.constant 0 : i32
    %0 = arith.cmpi eq, %arg1, %c0_i32 : i32
    %1 = arith.extui %0 : i1 to i32
    %c0_i32_0 = arith.constant 0 : i32
    %2 = arith.cmpi ne, %1, %c0_i32_0 : i32
    scf.if %2 {
      %cst_16 = arith.constant 0.000000e+00 : f32
      %20 = vector.broadcast %cst_16 : f32 to vector<4x512xf32>
      %c0_17 = arith.constant 0 : index
      %c0_18 = arith.constant 0 : index
      %21 = vector.load %arg10[%c0_17, %c0_18] : memref<4x512xf32, #tpu.memory_space<vmem>>, vector<4x512xf32>
      tpu.vector_store %arg10[%c0_17, %c0_18], %20 {strides = array<i32>} : memref<4x512xf32, #tpu.memory_space<vmem>>, vector<4x512xf32>,
    } else {
    }
    %c0 = arith.constant 0 : index
    %c0_1 = arith.constant 0 : index
    %c0_2 = arith.constant 0 : index
    %c0_3 = arith.constant 0 : index
    %3 = vector.load %arg2[%c0, %c0_1, %c0_2, %c0_3] : memref<2x2x64x8xbf16, #tpu.memory_space<vmem>>, vector<2x2x64x8xbf16>
    %4 = vector.shape_cast %3 : vector<2x2x64x8xbf16> to vector<256x8xbf16>
    %c0_4 = arith.constant 0 : index
    %c0_5 = arith.constant 0 : index
    %5 = vector.load %arg3[%c0_4, %c0_5] : memref<8x512xbf16, #tpu.memory_space<vmem>>, vector<8x512xbf16>
    %cst = arith.constant dense<0.000000e+00> : vector<256x512xf32>
    %6 = tpu.matmul %4, %5, %cst {dimension_numbers = #tpu.dot_dimension_numbers<[1], [0], [0], [1], [0, 0, 1, 1], [], []>} : vector<256x8xbf16>, vector<8x512xbf16>, vector<256x512xf32> -> vector<256x512xf32>
    %c0_6 = arith.constant 0 : index
    %c0_7 = arith.constant 0 : index
    %7 = vector.load %arg4[%c0_6, %c0_7] : memref<1x512xf32, #tpu.memory_space<vmem>>, vector<1x512xf32>
    %8 = vector.broadcast %7 : vector<1x512xf32> to vector<256x512xf32>
    %9 = arith.addf %6, %8 : vector<256x512xf32>
    %cst_8 = arith.constant 0.000000e+00 : f32
    %10 = vector.broadcast %cst_8 : f32 to vector<256x512xf32>
    %11 = arith.maximumf %9, %10 : vector<256x512xf32>
    %c0_9 = arith.constant 0 : index
    %c0_10 = arith.constant 0 : index
    %12 = vector.load %arg10[%c0_9, %c0_10] : memref<4x512xf32, #tpu.memory_space<vmem>>, vector<4x512xf32>
    %13 = vector.shape_cast %11 : vector<256x512xf32> to vector<4x64x512xf32>
    %cst_11 = arith.constant dense<0.000000e+00> : vector<4x512xf32>
    %14 = vector.multi_reduction <add>, %13, %cst_11 [1] : vector<4x64x512xf32> to vector<4x512xf32>
    %15 = arith.addf %12, %14 : vector<4x512xf32>
    %c0_12 = arith.constant 0 : index
    %c0_13 = arith.constant 0 : index
    %16 = vector.load %arg10[%c0_12, %c0_13] : memref<4x512xf32, #tpu.memory_space<vmem>>, vector<4x512xf32>
    tpu.vector_store %arg10[%c0_12, %c0_13], %15 {strides = array<i32>} : memref<4x512xf32, #tpu.memory_space<vmem>>, vector<4x512xf32>,
    %c0_i32_14 = arith.constant 0 : i32
    %17 = arith.cmpi eq, %arg1, %c0_i32_14 : i32
    %18 = arith.extui %17 : i1 to i32
    %c0_i32_15 = arith.constant 0 : i32
    %19 = arith.cmpi ne, %18, %c0_i32_15 : i32
    scf.if %19 {
      %c0_16 = arith.constant 0 : index
      %c0_17 = arith.constant 0 : index
      %20 = vector.load %arg10[%c0_16, %c0_17] : memref<4x512xf32, #tpu.memory_space<vmem>>, vector<4x512xf32>
      %cst_18 = arith.constant 1.562500e-02 : f32
      %21 = vector.broadcast %cst_18 : f32 to vector<4x512xf32>
      %22 = arith.mulf %20, %21 : vector<4x512xf32>
      %23 = arith.truncf %22 : vector<4x512xf32> to vector<4x512xbf16>
      %c0_19 = arith.constant 0 : index
      %c0_20 = arith.constant 0 : index
      %24 = vector.load %arg5[%c0_19, %c0_20] : memref<512x64xbf16, #tpu.memory_space<vmem>>, vector<512x64xbf16>
      %cst_21 = arith.constant dense<0.000000e+00> : vector<4x64xf32>
      %25 = tpu.matmul %23, %24, %cst_21 {dimension_numbers = #tpu.dot_dimension_numbers<[1], [0], [0], [1], [0, 0, 1, 1], [], []>} : vector<4x512xbf16>, vector<512x64xbf16>, vector<4x64xf32> -> vector<4x64xf32>
      %c0_22 = arith.constant 0 : index
      %c0_23 = arith.constant 0 : index
      %26 = vector.load %arg6[%c0_22, %c0_23] : memref<1x64xf32, #tpu.memory_space<vmem>>, vector<1x64xf32>
      %27 = vector.broadcast %26 : vector<1x64xf32> to vector<4x64xf32>
      %28 = arith.addf %25, %27 : vector<4x64xf32>
      %29 = vector.extract_strided_slice %28 {offsets = [0, 0], sizes = [2, 64], strides = [1, 1]} : vector<4x64xf32> to vector<2x64xf32>
      %30 = vector.extract_strided_slice %28 {offsets = [2, 0], sizes = [2, 64], strides = [1, 1]} : vector<4x64xf32> to vector<2x64xf32>
      %31 = arith.mulf %29, %30 : vector<2x64xf32>
      %cst_24 = arith.constant dense<0.000000e+00> : vector<2xf32>
      %32 = vector.multi_reduction <add>, %31, %cst_24 [1] : vector<2x64xf32> to vector<2xf32>
      %33 = vector.shape_cast %32 : vector<2xf32> to vector<2x1xf32>
      %c0_25 = arith.constant 0 : index
      %34 = memref.load %arg7[%c0_25] : memref<1xf32, #tpu.memory_space<smem>>
      %35 = vector.broadcast %34 : f32 to vector<2x1xf32>
      %36 = arith.mulf %33, %35 : vector<2x1xf32>
      %c0_26 = arith.constant 0 : index
      %37 = memref.load %arg8[%c0_26] : memref<1xf32, #tpu.memory_space<smem>>
      %38 = vector.broadcast %37 : f32 to vector<2x1xf32>
      %39 = arith.addf %36, %38 : vector<2x1xf32>
      %c0_i32_27 = arith.constant 0 : i32
      %40 = arith.sitofp %c0_i32_27 : i32 to f32
      %41 = vector.broadcast %40 : f32 to vector<2x127xf32>
      %42 = tpu.concatenate %39, %41 in 1 : vector<2x1xf32>, vector<2x127xf32> -> vector<2x128xf32>
      %c0_28 = arith.constant 0 : index
      %c0_29 = arith.constant 0 : index
      %c0_30 = arith.constant 0 : index
      %43 = vector.load %arg9[%c0_28, %c0_29, %c0_30] : memref<1x2x128xf32, #tpu.memory_space<vmem>>, vector<1x2x128xf32>
      %44 = vector.shape_cast %43 : vector<1x2x128xf32> to vector<2x128xf32>
      %45 = vector.shape_cast %42 : vector<2x128xf32> to vector<1x2x128xf32>
      tpu.vector_store %arg9[%c0_28, %c0_29, %c0_30], %45 {strides = array<i32>} : memref<1x2x128xf32, #tpu.memory_space<vmem>>, vector<1x2x128xf32>,
    } else {
    }
    return
  }
  func.func @transform_0(%arg0: i32, %arg1: i32) -> (i32, i32, i32, i32) {
    %c0_i32 = arith.constant 0 : i32
    %c0_i32_0 = arith.constant 0 : i32
    %c0_i32_1 = arith.constant 0 : i32
    return %c0_i32, %arg0, %arg1, %c0_i32_0 : i32, i32, i32, i32
  }
  func.func @transform_1(%arg0: i32, %arg1: i32) -> (i32, i32) {
    %c0_i32 = arith.constant 0 : i32
    %c0_i32_0 = arith.constant 0 : i32
    %c0_i32_1 = arith.constant 0 : i32
    return %c0_i32, %c0_i32_0 : i32, i32
  }
  func.func @transform_2(%arg0: i32, %arg1: i32) -> (i32, i32) {
    %c0_i32 = arith.constant 0 : i32
    %c0_i32_0 = arith.constant 0 : i32
    %c0_i32_1 = arith.constant 0 : i32
    return %c0_i32, %c0_i32_0 : i32, i32
  }
  func.func @transform_3(%arg0: i32, %arg1: i32) -> (i32, i32) {
    %c0_i32 = arith.constant 0 : i32
    %c0_i32_0 = arith.constant 0 : i32
    %c0_i32_1 = arith.constant 0 : i32
    return %c0_i32, %c0_i32_0 : i32, i32
  }
  func.func @transform_4(%arg0: i32, %arg1: i32) -> (i32, i32) {
    %c0_i32 = arith.constant 0 : i32
    %c0_i32_0 = arith.constant 0 : i32
    %c0_i32_1 = arith.constant 0 : i32
    return %c0_i32, %c0_i32_0 : i32, i32
  }
  func.func @transform_5(%arg0: i32, %arg1: i32) -> i32 {
    %c0_i32 = arith.constant 0 : i32
    %c0_i32_0 = arith.constant 0 : i32
    return %c0_i32 : i32
  }
  func.func @transform_6(%arg0: i32, %arg1: i32) -> i32 {
    %c0_i32 = arith.constant 0 : i32
    %c0_i32_0 = arith.constant 0 : i32
    return %c0_i32 : i32
  }
  func.func @transform_7(%arg0: i32, %arg1: i32) -> (i32, i32, i32) {
    %c0_i32 = arith.constant 0 : i32
    %c0_i32_0 = arith.constant 0 : i32
    %c0_i32_1 = arith.constant 0 : i32
    return %arg0, %c0_i32, %c0_i32_0 : i32, i32, i32
  }
}

</mosaic_0001>

<llo_original>
// kernel: squeeze.1
$region0: #{squeeze.1}
  %s0 = inlined_call_operand.vmem [shape: f32[2,2], index: 0, kind: input, shape index: {}]
  %s1 = inlined_call_operand.hbm [shape: f32[4], index: 1, kind: output, shape index: {}]
  $region1: #{squeeze.1} parent=0
    #allocation0 [shape = 'u8[512]{0}', space=vmem, size = 0x400, scoped, tag = 'operand span for operand 1']
    #allocation1 [shape = 's32[1]{0}', space=sflag, size = 0x4, scoped, tag = 'scoped memory for squeeze.1']
    #allocation2 [shape = 'u8[4096]{0}', space=vmem, size = 0x1000, scoped, tag = 'scoped mem for output reshape']
    #allocation3 [shape = 'u8[4096]{0}', space=vmem, size = 0x1000, scoped, tag = 'scoped mem for input reshape']
    %2 = vsyncpa [#allocation1], 0
    %s4 = ssub.s32 4, 1
    %v5 = vld [vmem:[%s0] sm:%s4]
    %6 = vst [vmem:[#allocation3] sm:%s4] %v5
    %v7 = vld [vmem:[#allocation3] sm:$0x1]
    %vm8 = vcmask 15360
    %9 = vst.msk [vmem:[#allocation2] sm:$0x1] %vm8, %v7
    %s10 = scalar_lea.vmem [#allocation3], 1
    %v11 = vld [vmem:[%s10] sm:$0x1]
    %12 = vrot.lane.b32.xlu0 %v11, 2
    %v13 = vpop.permute.xlu0 %12
    %vm14 = vcmask 31760
    %15 = vst.msk [vmem:[#allocation2] sm:$0x1] %vm14, %v13
    %s17 = ssub.s32 2, 1
    %v18 = vld [vmem:[#allocation2] sm:%s17]
    %s20 = ssub.s32 2, 1
    %21 = vst [vmem:[#allocation0] sm:%s20] %v18
    %23 = vsyncadd [#allocation1], 0
    %s25 = sshll.u32 [#allocation0], 4
    %s26 = int_to_ptr.vmem [resolvable:$true] %s25
    %s27 = sshll.u32 %s1, 4
    %s28 = int_to_ptr.hbm [resolvable:$true] %s27
    %30 = dma.vmem_to_hbm [thread:$0]  %s26, 16, %s28, [#allocation1]
    %32 = dma.done [#allocation1], 16
    %33 = vsyncpa [#allocation1], 1

// kernel: embedding_model_forward.1
$region0: #{embedding_model_forward.1}
  #allocation0 [shape = 'u32[]', space=smem, size = 0x4, offset = 0x4, fixed_abs, tag = 'smem constant byte address 0x4 - core index']
  #allocation1 [shape = 'u32[72,128]{1,0:T(1,128)}', space=vmem, size = 0x9000, scoped, tag = 'internal scratch']
  #allocation2 [shape = 'f32[4,512]{1,0:T(4,128)}', space=vmem, size = 0x2000, scoped, tag = 'scratch operand']
  #allocation3 [shape = 'f32[1]{0:T(128)S(6)}', space=smem, size = 0x200, scoped, tag = 'scoped memory for embedding_model_forward.1']
  #allocation4 [shape = 'f32[1]{0:T(128)S(6)}', space=smem, size = 0x200, scoped, tag = 'scoped memory for embedding_model_forward.1']
  %s0 = inlined_call_operand.vmem [shape: bf16[2,4,64,8], index: 0, kind: input, shape index: {}]
  %s1 = inlined_call_operand.vmem [shape: bf16[8,512], index: 1, kind: input, shape index: {}]
  %s2 = inlined_call_operand.vmem [shape: f32[1,512], index: 2, kind: input, shape index: {}]
  %s3 = inlined_call_operand.vmem [shape: bf16[512,64], index: 3, kind: input, shape index: {}]
  %s4 = inlined_call_operand.vmem [shape: f32[1,64], index: 4, kind: input, shape index: {}]
  %s5 = inlined_call_operand.<no memory space> [shape: f32[1], index: 5, kind: input, shape index: {}]
  %s6 = inlined_call_operand.<no memory space> [shape: f32[1], index: 6, kind: input, shape index: {}]
  %s7 = inlined_call_operand.vmem [shape: f32[2,2,128], index: 7, kind: output, shape index: {}]
  %s8 = sld [smem:[#allocation0]]
  $region110: #{embedding_model_forward.1} parent=0
    _
  %s10 = ssub.s32 1, %s8
  %s11 = scalar_select 0, %s10, %s8
  %12 = sst [smem:[#allocation3]] %s5
  %13 = sst [smem:[#allocation4]] %s6
  $region1: #{embedding_model_forward.1} parent=0
    #allocation5 [shape = 'u8[131072]{0}', space=vmem, size = 0x20000, scoped, tag = 'input window, operand 0']
    loop: start=0, step=1, limit=4
    $region2: #{embedding_model_forward.1} parent=1 // loop_pre_header
      _
    $region3: #{embedding_model_forward.1} parent=1 // loop_header
      %s15 = sphi 0, %s19
      %p16 = scmp.ge.s32.totalorder %s15, 4
      %s22 = sphi 0, %s34
      %s23 = sphi 0, %s30
      %s24 = sphi 0, %s22
      %s25 = sphi 0, %s23
      %s26 = sphi 0, %s24
      %s27 = sphi 0, %s25
      %s39 = sphi 0, %s41
      %s42 = sphi 0, %s39
      %s43 = sphi 0, %s42
      %s59 = sphi 0, %s43
      %s63 = sphi 0, %s63
      %s65 = sphi 0, %s63
      %s66 = sphi 0, %s65
      %s80 = sphi 0, %s66
      %s84 = sphi 0, %s84
      %s86 = sphi 0, %s84
      %s87 = sphi 0, %s86
      %s101 = sphi 0, %s87
      %s105 = sphi 0, %s105
      %s107 = sphi 0, %s105
      %s108 = sphi 0, %s107
      %s122 = sphi 0, %s108
      %s126 = sphi 0, %s126
      %s128 = sphi 0, %s126
      %s129 = sphi 0, %s128
      %s143 = sphi 0, %s129
      %s147 = sphi 0, %s147
      %s149 = sphi 0, %s147
      %s150 = sphi 0, %s149
      %s164 = sphi 0, %s150
      %s168 = sphi 0, %s168
      %s170 = sphi 0, %s168
      %s171 = sphi 0, %s170
      %s185 = sphi 0, %s171
      %s191 = sphi 0, %s193
      %s194 = sphi 0, %s191
      %s195 = sphi 0, %s194
      %s211 = sphi 0, %s195
    $region4: #{embedding_model_forward.1} parent=1 // loop_header_branch
      %18 = sbr.rel (%p16) target = $region8
    $region5: #{embedding_model_forward.1} parent=1 // loop_body
      %s20 = ssub.s32 %s15, 1
      %s21 = ssub.s32 %s15, 2
      %s28 = sadd.s32 1, %s23
      %p29 = scmp.ge.s32.totalorder %s28, 1
      %s30 = scalar_select %p29, 0, %s28
      %s31 = sadd.s32 1, %s22
      %s32 = scalar_select %p29, %s31, %s22
      %p33 = scmp.ge.s32.totalorder %s32, 2
      %s34 = scalar_select %p33, 0, %s32
      %s35 = ssub.s32 %s22, %s34
      %s36 = ssub.s32 %s23, %s30
      %s37 = sor.u32 %s35, %s36
      %p38 = scmp.eq.s32.totalorder %s37, 0
      %s40 = sadd.s32 %s39, 1
      %s41 = scalar_select %p38, %s39, %s40
      %p44 = pneg %p38
      %p45 = scmp.eq.s32.totalorder %s15, 1
      %p46 = por %p44, %p45
      %p47 = scmp.ne.s32.totalorder %s39, %s42
      %p48 = scmp.eq.s32.totalorder %s15, 0
      %p49 = por %p47, %p48
      %p50 = scmp.ne.s32.totalorder %s39, %s42
      %p51 = scmp.eq.s32.totalorder %s20, 1
      %p52 = por %p50, %p51
      %p53 = scmp.ne.s32.totalorder %s42, %s43
      %p54 = scmp.eq.s32.totalorder %s20, 0
      %p55 = por %p53, %p54
      %p56 = scmp.ne.s32.totalorder %s42, %s43
      %p57 = scmp.eq.s32.totalorder %s21, 1
      %p58 = por %p56, %p57
      %p60 = scmp.ne.s32.totalorder %s43, %s59
      %p61 = scmp.eq.s32.totalorder %s21, 0
      %p62 = por %p60, %p61
      %s64 = sadd.s32 %s63, 1
      %p67 = scmp.eq.s32.totalorder %s15, 1
      %p68 = scmp.ne.s32.totalorder %s63, %s65
      %p69 = scmp.eq.s32.totalorder %s15, 0
      %p70 = por %p68, %p69
      %p71 = scmp.ne.s32.totalorder %s63, %s65
      %p72 = scmp.eq.s32.totalorder %s20, 1
      %p73 = por %p71, %p72
      %p74 = scmp.ne.s32.totalorder %s65, %s66
      %p75 = scmp.eq.s32.totalorder %s20, 0
      %p76 = por %p74, %p75
      %p77 = scmp.ne.s32.totalorder %s65, %s66
      %p78 = scmp.eq.s32.totalorder %s21, 1
      %p79 = por %p77, %p78
      %p81 = scmp.ne.s32.totalorder %s66, %s80
      %p82 = scmp.eq.s32.totalorder %s21, 0
      %p83 = por %p81, %p82
      %s85 = sadd.s32 %s84, 1
      %p88 = scmp.eq.s32.totalorder %s15, 1
      %p89 = scmp.ne.s32.totalorder %s84, %s86
      %p90 = scmp.eq.s32.totalorder %s15, 0
      %p91 = por %p89, %p90
      %p92 = scmp.ne.s32.totalorder %s84, %s86
      %p93 = scmp.eq.s32.totalorder %s20, 1
      %p94 = por %p92, %p93
      %p95 = scmp.ne.s32.totalorder %s86, %s87
      %p96 = scmp.eq.s32.totalorder %s20, 0
      %p97 = por %p95, %p96
      %p98 = scmp.ne.s32.totalorder %s86, %s87
      %p99 = scmp.eq.s32.totalorder %s21, 1
      %p100 = por %p98, %p99
      %p102 = scmp.ne.s32.totalorder %s87, %s101
      %p103 = scmp.eq.s32.totalorder %s21, 0
      %p104 = por %p102, %p103
      %s106 = sadd.s32 %s105, 1
      %p109 = scmp.eq.s32.totalorder %s15, 1
      %p110 = scmp.ne.s32.totalorder %s105, %s107
      %p111 = scmp.eq.s32.totalorder %s15, 0
      %p112 = por %p110, %p111
      %p113 = scmp.ne.s32.totalorder %s105, %s107
      %p114 = scmp.eq.s32.totalorder %s20, 1
      %p115 = por %p113, %p114
      %p116 = scmp.ne.s32.totalorder %s107, %s108
      %p117 = scmp.eq.s32.totalorder %s20, 0
      %p118 = por %p116, %p117
      %p119 = scmp.ne.s32.totalorder %s107, %s108
      %p120 = scmp.eq.s32.totalorder %s21, 1
      %p121 = por %p119, %p120
      %p123 = scmp.ne.s32.totalorder %s108, %s122
      %p124 = scmp.eq.s32.totalorder %s21, 0
      %p125 = por %p123, %p124
      %s127 = sadd.s32 %s126, 1
      %p130 = scmp.eq.s32.totalorder %s15, 1
      %p131 = scmp.ne.s32.totalorder %s126, %s128
      %p132 = scmp.eq.s32.totalorder %s15, 0
      %p133 = por %p131, %p132
      %p134 = scmp.ne.s32.totalorder %s126, %s128
      %p135 = scmp.eq.s32.totalorder %s20, 1
      %p136 = por %p134, %p135
      %p137 = scmp.ne.s32.totalorder %s128, %s129
      %p138 = scmp.eq.s32.totalorder %s20, 0
      %p139 = por %p137, %p138
      %p140 = scmp.ne.s32.totalorder %s128, %s129
      %p141 = scmp.eq.s32.totalorder %s21, 1
      %p142 = por %p140, %p141
      %p144 = scmp.ne.s32.totalorder %s129, %s143
      %p145 = scmp.eq.s32.totalorder %s21, 0
      %p146 = por %p144, %p145
      %s148 = sadd.s32 %s147, 1
      %p151 = scmp.eq.s32.totalorder %s15, 1
      %p152 = scmp.ne.s32.totalorder %s147, %s149
      %p153 = scmp.eq.s32.totalorder %s15, 0
      %p154 = por %p152, %p153
      %p155 = scmp.ne.s32.totalorder %s147, %s149
      %p156 = scmp.eq.s32.totalorder %s20, 1
      %p157 = por %p155, %p156
      %p158 = scmp.ne.s32.totalorder %s149, %s150
      %p159 = scmp.eq.s32.totalorder %s20, 0
      %p160 = por %p158, %p159
      %p161 = scmp.ne.s32.totalorder %s149, %s150
      %p162 = scmp.eq.s32.totalorder %s21, 1
      %p163 = por %p161, %p162
      %p165 = scmp.ne.s32.totalorder %s150, %s164
      %p166 = scmp.eq.s32.totalorder %s21, 0
      %p167 = por %p165, %p166
      %s169 = sadd.s32 %s168, 1
      %p172 = scmp.eq.s32.totalorder %s15, 1
      %p173 = scmp.ne.s32.totalorder %s168, %s170
      %p174 = scmp.eq.s32.totalorder %s15, 0
      %p175 = por %p173, %p174
      %p176 = scmp.ne.s32.totalorder %s168, %s170
      %p177 = scmp.eq.s32.totalorder %s20, 1
      %p178 = por %p176, %p177
      %p179 = scmp.ne.s32.totalorder %s170, %s171
      %p180 = scmp.eq.s32.totalorder %s20, 0
      %p181 = por %p179, %p180
      %p182 = scmp.ne.s32.totalorder %s170, %s171
      %p183 = scmp.eq.s32.totalorder %s21, 1
      %p184 = por %p182, %p183
      %p186 = scmp.ne.s32.totalorder %s171, %s185
      %p187 = scmp.eq.s32.totalorder %s21, 0
      %p188 = por %p186, %p187
      %s189 = ssub.s32 %s22, %s34
      %p190 = scmp.eq.s32.totalorder %s189, 0
      %s192 = sadd.s32 %s191, 1
      %s193 = scalar_select %p190, %s191, %s192
      %p196 = pneg %p190
      %p197 = scmp.eq.s32.totalorder %s15, 1
      %p198 = por %p196, %p197
      %p199 = scmp.ne.s32.totalorder %s191, %s194
      %p200 = scmp.eq.s32.totalorder %s15, 0
      %p201 = por %p199, %p200
      %p202 = scmp.ne.s32.totalorder %s191, %s194
      %p203 = scmp.eq.s32.totalorder %s20, 1
      %p204 = por %p202, %p203
      %p205 = scmp.ne.s32.totalorder %s194, %s195
      %p206 = scmp.eq.s32.totalorder %s20, 0
      %p207 = por %p205, %p206
      %p208 = scmp.ne.s32.totalorder %s194, %s195
      %p209 = scmp.eq.s32.totalorder %s21, 1
      %p210 = por %p208, %p209
      %p212 = scmp.ne.s32.totalorder %s195, %s211
      %p213 = scmp.eq.s32.totalorder %s21, 0
      %p214 = por %p212, %p213
      %p215 = scmp.le.s32.totalorder 1, %s15
      %p216 = scmp.lt.s32.totalorder %s15, 3
      %p217 = pnand %p215, %p216
      %p218 = pneg %p217
      // Predicated region
      $region9: #{embedding_model_forward.1} parent=5 // pred_check
        _
      $region10: #{embedding_model_forward.1} parent=5 // pred_check_branch
        %220 = sbr.rel (%p217) target = $region12
      $region11: #{embedding_model_forward.1} parent=5 // pred_region
        %s221 = ssub.s32 %s15, 1
        // Predicated region
        $region13: #{embedding_model_forward.1} parent=11 // pred_check
          %p222 = pneg %p76
        $region14: #{embedding_model_forward.1} parent=11 // pred_check_branch
          %224 = sbr.rel (%p222) target = $region16
        $region15: #{embedding_model_forward.1} parent=11 // pred_region
          _
        $region16: #{embedding_model_forward.1} parent=11 // pred_fallthru
          _
        // Predicated region
        $region17: #{embedding_model_forward.1} parent=11 // pred_check
          %p225 = pneg %p97
        $region18: #{embedding_model_forward.1} parent=11 // pred_check_branch
          %227 = sbr.rel (%p225) target = $region20
        $region19: #{embedding_model_forward.1} parent=11 // pred_region
          _
        $region20: #{embedding_model_forward.1} parent=11 // pred_fallthru
          _
        // Predicated region
        $region21: #{embedding_model_forward.1} parent=11 // pred_check
          %p228 = pneg %p118
        $region22: #{embedding_model_forward.1} parent=11 // pred_check_branch
          %230 = sbr.rel (%p228) target = $region24
        $region23: #{embedding_model_forward.1} parent=11 // pred_region
          _
        $region24: #{embedding_model_forward.1} parent=11 // pred_fallthru
          _
        // Predicated region
        $region25: #{embedding_model_forward.1} parent=11 // pred_check
          %p231 = pneg %p139
        $region26: #{embedding_model_forward.1} parent=11 // pred_check_branch
          %233 = sbr.rel (%p231) target = $region28
        $region27: #{embedding_model_forward.1} parent=11 // pred_region
          _
        $region28: #{embedding_model_forward.1} parent=11 // pred_fallthru
          _
        // Predicated region
        $region29: #{embedding_model_forward.1} parent=11 // pred_check
          %p234 = pneg %p160
        $region30: #{embedding_model_forward.1} parent=11 // pred_check_branch
          %236 = sbr.rel (%p234) target = $region32
        $region31: #{embedding_model_forward.1} parent=11 // pred_region
          _
        $region32: #{embedding_model_forward.1} parent=11 // pred_fallthru
          _
        // Predicated region
        $region33: #{embedding_model_forward.1} parent=11 // pred_check
          %p237 = pneg %p181
        $region34: #{embedding_model_forward.1} parent=11 // pred_check_branch
          %239 = sbr.rel (%p237) target = $region36
        $region35: #{embedding_model_forward.1} parent=11 // pred_region
          _
        $region36: #{embedding_model_forward.1} parent=11 // pred_fallthru
          _
      $region12: #{embedding_model_forward.1} parent=5 // pred_fallthru
        _
      %p240 = scmp.lt.s32.totalorder %s15, 2
      // Predicated region
      $region37: #{embedding_model_forward.1} parent=5 // pred_check
        %p241 = pneg %p240
      $region38: #{embedding_model_forward.1} parent=5 // pred_check_branch
        %243 = sbr.rel (%p241) target = $region40
      $region39: #{embedding_model_forward.1} parent=5 // pred_region
        // Predicated region
        $region41: #{embedding_model_forward.1} parent=39 // pred_check
          %p244 = pneg %p49
        $region42: #{embedding_model_forward.1} parent=39 // pred_check_branch
          %246 = sbr.rel (%p244) target = $region44
        $region43: #{embedding_model_forward.1} parent=39 // pred_region
          %s247 = sand.u32 %s39, 1
          %s248 = sand.u32 %s39, 1
          %s249 = smul.addr %s248, 128
          %s250 = scalar_lea.vmem [#allocation5], %s249
          %s251 = smul.u32 2, %s22
          %s252 = smul.u32 8, %s23
          %s253 = smul.addr %s251, 8
          %s254 = sadd.s32 %s252, %s253
          %s255 = smul.addr %s254, 4
          %s256 = scalar_lea.vmem %s0, %s255
          // Predicated region
          $region45: #{embedding_model_forward.1} parent=43 // pred_check
            _
          $region46: #{embedding_model_forward.1} parent=43 // pred_check_branch
            %258 = sbr.rel (0) target = $region48
          $region47: #{embedding_model_forward.1} parent=43 // pred_region
            // Predicated region
            $region49: #{embedding_model_forward.1} parent=47 // pred_check
              _
            $region50: #{embedding_model_forward.1} parent=47 // pred_check_branch
              %260 = sbr.rel target = $region52
            $region51: #{embedding_model_forward.1} parent=47 // pred_region
              // Predicated region
              $region64: #{embedding_model_forward.1} parent=51 // pred_check
                _
              $region65: #{embedding_model_forward.1} parent=51 // pred_check_branch
                %338 = sbr.rel (0) target = $region67
              $region66: #{embedding_model_forward.1} parent=51 // pred_region
                loop: start=0, step=1, limit=1
                $region68: #{embedding_model_forward.1} parent=66 // loop_pre_header
                  _
                $region69: #{embedding_model_forward.1} parent=66 // loop_header
                  %s340 = sphi 0, %s344
                  %p341 = scmp.ge.s32.totalorder %s340, 1
                  %s345 = sphi %s256, %s256
                  %s346 = sphi %s250, %s250
                $region70: #{embedding_model_forward.1} parent=66 // loop_header_branch
                  %343 = sbr.rel (%p341) target = $region74
                $region71: #{embedding_model_forward.1} parent=66 // loop_body
                  _
                $region72: #{embedding_model_forward.1} parent=66 // loop_footer
                  %s344 = sadd.s32 1, %s340
                $region73: #{embedding_model_forward.1} parent=66 // loop_footer_branch
                  %339 = sbr.rel target = $region69
                $region74: #{embedding_model_forward.1} parent=66 // loop_exit
                  _
                %s348 = ssub.s32 16, 1
                loop: start=0, step=1, limit=1
                $region75: #{embedding_model_forward.1} parent=66 // loop_pre_header
                  _
                $region76: #{embedding_model_forward.1} parent=66 // loop_header
                  %s350 = sphi 0, %s354
                  %p351 = scmp.ge.s32.totalorder %s350, 1
                  %s355 = sphi %s256, %s256
                  %s356 = sphi %s250, %s250
                $region77: #{embedding_model_forward.1} parent=66 // loop_header_branch
                  %353 = sbr.rel (%p351) target = $region81
                $region78: #{embedding_model_forward.1} parent=66 // loop_body
                  %v357 = vld [vmem:[%s355] sm:%s348]
                  %358 = vst [vmem:[%s356] sm:%s348] %v357
                  %v359 = vld [vmem:[%s355 + $0x4] sm:%s348]
                  %360 = vst [vmem:[%s356 + $0x4] sm:%s348] %v359
                  %v361 = vld [vmem:[%s355 + $0x8] sm:%s348]
                  %362 = vst [vmem:[%s356 + $0x8] sm:%s348] %v361
                  %v363 = vld [vmem:[%s355 + $0xc] sm:%s348]
                  %364 = vst [vmem:[%s356 + $0xc] sm:%s348] %v363
                  %v365 = vld [vmem:[%s355 + $0x10] sm:%s348]
                  %366 = vst [vmem:[%s356 + $0x10] sm:%s348] %v365
                  %v367 = vld [vmem:[%s355 + $0x14] sm:%s348]
                  %368 = vst [vmem:[%s356 + $0x14] sm:%s348] %v367
                  %v369 = vld [vmem:[%s355 + $0x18] sm:%s348]
                  %370 = vst [vmem:[%s356 + $0x18] sm:%s348] %v369
                  %v371 = vld [vmem:[%s355 + $0x1c] sm:%s348]
                  %372 = vst [vmem:[%s356 + $0x1c] sm:%s348] %v371
                  %v373 = vld [vmem:[%s355 + $0x20] sm:%s348]
                  %374 = vst [vmem:[%s356 + $0x20] sm:%s348] %v373
                  %v375 = vld [vmem:[%s355 + $0x24] sm:%s348]
                  %376 = vst [vmem:[%s356 + $0x24] sm:%s348] %v375
                  %v377 = vld [vmem:[%s355 + $0x28] sm:%s348]
                  %378 = vst [vmem:[%s356 + $0x28] sm:%s348] %v377
                  %v379 = vld [vmem:[%s355 + $0x2c] sm:%s348]
                  %380 = vst [vmem:[%s356 + $0x2c] sm:%s348] %v379
                  %v381 = vld [vmem:[%s355 + $0x30] sm:%s348]
                  %382 = vst [vmem:[%s356 + $0x30] sm:%s348] %v381
                  %v383 = vld [vmem:[%s355 + $0x34] sm:%s348]
                  %384 = vst [vmem:[%s356 + $0x34] sm:%s348] %v383
                  %v385 = vld [vmem:[%s355 + $0x38] sm:%s348]
                  %386 = vst [vmem:[%s356 + $0x38] sm:%s348] %v385
                  %v387 = vld [vmem:[%s355 + $0x3c] sm:%s348]
                  %388 = vst [vmem:[%s356 + $0x3c] sm:%s348] %v387
                  %v389 = vld [vmem:[%s355 + $0x80] sm:%s348]
                  %390 = vst [vmem:[%s356 + $0x40] sm:%s348] %v389
                  %v391 = vld [vmem:[%s355 + $0x84] sm:%s348]
                  %392 = vst [vmem:[%s356 + $0x44] sm:%s348] %v391
                  %v393 = vld [vmem:[%s355 + $0x88] sm:%s348]
                  %394 = vst [vmem:[%s356 + $0x48] sm:%s348] %v393
                  %v395 = vld [vmem:[%s355 + $0x8c] sm:%s348]
                  %396 = vst [vmem:[%s356 + $0x4c] sm:%s348] %v395
                  %v397 = vld [vmem:[%s355 + $0x90] sm:%s348]
                  %398 = vst [vmem:[%s356 + $0x50] sm:%s348] %v397
                  %v399 = vld [vmem:[%s355 + $0x94] sm:%s348]
                  %400 = vst [vmem:[%s356 + $0x54] sm:%s348] %v399
                  %v401 = vld [vmem:[%s355 + $0x98] sm:%s348]
                  %402 = vst [vmem:[%s356 + $0x58] sm:%s348] %v401
                  %v403 = vld [vmem:[%s355 + $0x9c] sm:%s348]
                  %404 = vst [vmem:[%s356 + $0x5c] sm:%s348] %v403
                  %v405 = vld [vmem:[%s355 + $0xa0] sm:%s348]
                  %406 = vst [vmem:[%s356 + $0x60] sm:%s348] %v405
                  %v407 = vld [vmem:[%s355 + $0xa4] sm:%s348]
                  %408 = vst [vmem:[%s356 + $0x64] sm:%s348] %v407
                  %v409 = vld [vmem:[%s355 + $0xa8] sm:%s348]
                  %410 = vst [vmem:[%s356 + $0x68] sm:%s348] %v409
                  %v411 = vld [vmem:[%s355 + $0xac] sm:%s348]
                  %412 = vst [vmem:[%s356 + $0x6c] sm:%s348] %v411
                  %v413 = vld [vmem:[%s355 + $0xb0] sm:%s348]
                  %414 = vst [vmem:[%s356 + $0x70] sm:%s348] %v413
                  %v415 = vld [vmem:[%s355 + $0xb4] sm:%s348]
                  %416 = vst [vmem:[%s356 + $0x74] sm:%s348] %v415
                  %v417 = vld [vmem:[%s355 + $0xb8] sm:%s348]
                  %418 = vst [vmem:[%s356 + $0x78] sm:%s348] %v417
                  %v419 = vld [vmem:[%s355 + $0xbc] sm:%s348]
                  %420 = vst [vmem:[%s356 + $0x7c] sm:%s348] %v419
                $region79: #{embedding_model_forward.1} parent=66 // loop_footer
                  %s354 = sadd.s32 1, %s350
                $region80: #{embedding_model_forward.1} parent=66 // loop_footer_branch
                  %349 = sbr.rel target = $region76
                $region81: #{embedding_model_forward.1} parent=66 // loop_exit
                  _
              $region67: #{embedding_model_forward.1} parent=51 // pred_fallthru
                _
            $region52: #{embedding_model_forward.1} parent=47 // pred_fallthru
              _
            // Predicated region
            $region53: #{embedding_model_forward.1} parent=47 // pred_check
              _
            $region54: #{embedding_model_forward.1} parent=47 // pred_check_branch
              %262 = sbr.rel (0) target = $region56
            $region55: #{embedding_model_forward.1} parent=47 // pred_region
              %s264 = ssub.s32 16, 1
              loop: start=0, step=1, limit=1
              $region57: #{embedding_model_forward.1} parent=55 // loop_pre_header
                _
              $region58: #{embedding_model_forward.1} parent=55 // loop_header
                %s266 = sphi 0, %s270
                %p267 = scmp.ge.s32.totalorder %s266, 1
                %s271 = sphi %s256, %s256
                %s272 = sphi %s250, %s250
              $region59: #{embedding_model_forward.1} parent=55 // loop_header_branch
                %269 = sbr.rel (%p267) target = $region63
              $region60: #{embedding_model_forward.1} parent=55 // loop_body
                %v273 = vld [vmem:[%s271] sm:%s264]
                %274 = vst [vmem:[%s272] sm:%s264] %v273
                %v275 = vld [vmem:[%s271 + $0x4] sm:%s264]
                %276 = vst [vmem:[%s272 + $0x4] sm:%s264] %v275
                %v277 = vld [vmem:[%s271 + $0x8] sm:%s264]
                %278 = vst [vmem:[%s272 + $0x8] sm:%s264] %v277
                %v279 = vld [vmem:[%s271 + $0xc] sm:%s264]
                %280 = vst [vmem:[%s272 + $0xc] sm:%s264] %v279
                %v281 = vld [vmem:[%s271 + $0x10] sm:%s264]
                %282 = vst [vmem:[%s272 + $0x10] sm:%s264] %v281
                %v283 = vld [vmem:[%s271 + $0x14] sm:%s264]
                %284 = vst [vmem:[%s272 + $0x14] sm:%s264] %v283
                %v285 = vld [vmem:[%s271 + $0x18] sm:%s264]
                %286 = vst [vmem:[%s272 + $0x18] sm:%s264] %v285
                %v287 = vld [vmem:[%s271 + $0x1c] sm:%s264]
                %288 = vst [vmem:[%s272 + $0x1c] sm:%s264] %v287
                %v289 = vld [vmem:[%s271 + $0x20] sm:%s264]
                %290 = vst [vmem:[%s272 + $0x20] sm:%s264] %v289
                %v291 = vld [vmem:[%s271 + $0x24] sm:%s264]
                %292 = vst [vmem:[%s272 + $0x24] sm:%s264] %v291
                %v293 = vld [vmem:[%s271 + $0x28] sm:%s264]
                %294 = vst [vmem:[%s272 + $0x28] sm:%s264] %v293
                %v295 = vld [vmem:[%s271 + $0x2c] sm:%s264]
                %296 = vst [vmem:[%s272 + $0x2c] sm:%s264] %v295
                %v297 = vld [vmem:[%s271 + $0x30] sm:%s264]
                %298 = vst [vmem:[%s272 + $0x30] sm:%s264] %v297
                %v299 = vld [vmem:[%s271 + $0x34] sm:%s264]
                %300 = vst [vmem:[%s272 + $0x34] sm:%s264] %v299
                %v301 = vld [vmem:[%s271 + $0x38] sm:%s264]
                %302 = vst [vmem:[%s272 + $0x38] sm:%s264] %v301
                %v303 = vld [vmem:[%s271 + $0x3c] sm:%s264]
                %304 = vst [vmem:[%s272 + $0x3c] sm:%s264] %v303
                %v305 = vld [vmem:[%s271 + $0x80] sm:%s264]
                %306 = vst [vmem:[%s272 + $0x40] sm:%s264] %v305
                %v307 = vld [vmem:[%s271 + $0x84] sm:%s264]
                %308 = vst [vmem:[%s272 + $0x44] sm:%s264] %v307
                %v309 = vld [vmem:[%s271 + $0x88] sm:%s264]
                %310 = vst [vmem:[%s272 + $0x48] sm:%s264] %v309
                %v311 = vld [vmem:[%s271 + $0x8c] sm:%s264]
                %312 = vst [vmem:[%s272 + $0x4c] sm:%s264] %v311
                %v313 = vld [vmem:[%s271 + $0x90] sm:%s264]
                %314 = vst [vmem:[%s272 + $0x50] sm:%s264] %v313
                %v315 = vld [vmem:[%s271 + $0x94] sm:%s264]
                %316 = vst [vmem:[%s272 + $0x54] sm:%s264] %v315
                %v317 = vld [vmem:[%s271 + $0x98] sm:%s264]
                %318 = vst [vmem:[%s272 + $0x58] sm:%s264] %v317
                %v319 = vld [vmem:[%s271 + $0x9c] sm:%s264]
                %320 = vst [vmem:[%s272 + $0x5c] sm:%s264] %v319
                %v321 = vld [vmem:[%s271 + $0xa0] sm:%s264]
                %322 = vst [vmem:[%s272 + $0x60] sm:%s264] %v321
                %v323 = vld [vmem:[%s271 + $0xa4] sm:%s264]
                %324 = vst [vmem:[%s272 + $0x64] sm:%s264] %v323
                %v325 = vld [vmem:[%s271 + $0xa8] sm:%s264]
                %326 = vst [vmem:[%s272 + $0x68] sm:%s264] %v325
                %v327 = vld [vmem:[%s271 + $0xac] sm:%s264]
                %328 = vst [vmem:[%s272 + $0x6c] sm:%s264] %v327
                %v329 = vld [vmem:[%s271 + $0xb0] sm:%s264]
                %330 = vst [vmem:[%s272 + $0x70] sm:%s264] %v329
                %v331 = vld [vmem:[%s271 + $0xb4] sm:%s264]
                %332 = vst [vmem:[%s272 + $0x74] sm:%s264] %v331
                %v333 = vld [vmem:[%s271 + $0xb8] sm:%s264]
                %334 = vst [vmem:[%s272 + $0x78] sm:%s264] %v333
                %v335 = vld [vmem:[%s271 + $0xbc] sm:%s264]
                %336 = vst [vmem:[%s272 + $0x7c] sm:%s264] %v335
              $region61: #{embedding_model_forward.1} parent=55 // loop_footer
                %s270 = sadd.s32 1, %s266
              $region62: #{embedding_model_forward.1} parent=55 // loop_footer_branch
                %265 = sbr.rel target = $region58
              $region63: #{embedding_model_forward.1} parent=55 // loop_exit
                _
            $region56: #{embedding_model_forward.1} parent=47 // pred_fallthru
              _
          $region48: #{embedding_model_forward.1} parent=43 // pred_fallthru
            _
          %421 = vnop
        $region44: #{embedding_model_forward.1} parent=39 // pred_fallthru
          _
      $region40: #{embedding_model_forward.1} parent=5 // pred_fallthru
        _
      %p422 = scmp.le.s32.totalorder 1, %s15
      %p423 = scmp.lt.s32.totalorder %s15, 3
      %p424 = pnand %p422, %p423
      %p425 = pneg %p424
      // Predicated region
      $region82: #{embedding_model_forward.1} parent=5 // pred_check
        _
      $region83: #{embedding_model_forward.1} parent=5 // pred_check_branch
        %427 = sbr.rel (%p424) target = $region85
      $region84: #{embedding_model_forward.1} parent=5 // pred_region
        %s428 = ssub.s32 %s15, 1
        %s429 = sand.u32 %s42, 1
        %s430 = sand.u32 %s42, 1
        %s431 = smul.addr %s430, 128
        %s432 = scalar_lea.vmem [#allocation5], %s431
        // Predicated region
        $region86: #{embedding_model_forward.1} parent=84 // pred_check
          %p433 = pneg %p55
        $region87: #{embedding_model_forward.1} parent=84 // pred_check_branch
          %435 = sbr.rel (%p433) target = $region89
        $region88: #{embedding_model_forward.1} parent=84 // pred_region
          _
        $region89: #{embedding_model_forward.1} parent=84 // pred_fallthru
          _
        %s436 = sand.u32 %s42, 1
        %s437 = sand.u32 %s42, 1
        %s438 = smul.addr %s437, 128
        %s439 = scalar_lea.vmem [#allocation5], %s438
        %p440 = pneg %p55
        %p441 = pneg %p52
        %p442 = pneg %p76
        %p443 = pneg %p73
        %p444 = pneg %p97
        %p445 = pneg %p94
        %p446 = pneg %p118
        %p447 = pneg %p115
        %p448 = pneg %p139
        %p449 = pneg %p136
        %p450 = pneg %p160
        %p451 = pneg %p157
        %p452 = pneg %p181
        %p453 = pneg %p178
        %p454 = pneg %p207
        %p455 = pneg %p204
        %p456 = scmp.lt.s32.totalorder %s24, 1
        %s457 = scalar_select %p456, %s24, 1
        %s458 = smul.addr %s457, 2
        %s459 = scalar_lea.vmem %s7, %s458
        %s460 = smul.u32 2, %s24
        %s461 = smul.u32 8, %s25
        %p462 = scmp.lt.s32.totalorder %s24, 1
        %s463 = scalar_select %p462, %s24, 1
        %s464 = smul.addr %s463, 2
        %s465 = scalar_lea.vmem %s7, %s464
        %p467 = scmp.eq.s32.totalorder %s25, 0
        // Predicated region
        $region90: #{embedding_model_forward.1} parent=84 // pred_check
          %p468 = pneg %p467
        $region91: #{embedding_model_forward.1} parent=84 // pred_check_branch
          %470 = sbr.rel (%p468) target = $region93
        $region92: #{embedding_model_forward.1} parent=84 // pred_region
          %471 = vst [vmem:[#allocation2] sm:$0xff] 0.0
          %472 = vst [vmem:[#allocation2 + $0x8] sm:$0xff] 0.0
        $region93: #{embedding_model_forward.1} parent=84 // pred_fallthru
          _
        %v473 = vld [vmem:[%s432] sm:$0xf]
        %v474 = vld [vmem:[%s432 + $0x4] sm:$0xf]
        %v475 = vld [vmem:[%s432 + $0x8] sm:$0xf]
        %v476 = vld [vmem:[%s432 + $0xc] sm:$0xf]
        %v477 = vld [vmem:[%s432 + $0x10] sm:$0xf]
        %v478 = vld [vmem:[%s432 + $0x14] sm:$0xf]
        %v479 = vld [vmem:[%s432 + $0x18] sm:$0xf]
        %v480 = vld [vmem:[%s432 + $0x1c] sm:$0xf]
        %v481 = vld [vmem:[%s432 + $0x20] sm:$0xf]
        %v482 = vld [vmem:[%s432 + $0x24] sm:$0xf]
        %v483 = vld [vmem:[%s432 + $0x28] sm:$0xf]
        %v484 = vld [vmem:[%s432 + $0x2c] sm:$0xf]
        %v485 = vld [vmem:[%s432 + $0x30] sm:$0xf]
        %v486 = vld [vmem:[%s432 + $0x34] sm:$0xf]
        %v487 = vld [vmem:[%s432 + $0x38] sm:$0xf]
        %v488 = vld [vmem:[%s432 + $0x3c] sm:$0xf]
        %v489 = vld [vmem:[%s432 + $0x40] sm:$0xf]
        %v490 = vld [vmem:[%s432 + $0x44] sm:$0xf]
        %v491 = vld [vmem:[%s432 + $0x48] sm:$0xf]
        %v492 = vld [vmem:[%s432 + $0x4c] sm:$0xf]
        %v493 = vld [vmem:[%s432 + $0x50] sm:$0xf]
        %v494 = vld [vmem:[%s432 + $0x54] sm:$0xf]
        %v495 = vld [vmem:[%s432 + $0x58] sm:$0xf]
        %v496 = vld [vmem:[%s432 + $0x5c] sm:$0xf]
        %v497 = vld [vmem:[%s432 + $0x60] sm:$0xf]
        %v498 = vld [vmem:[%s432 + $0x64] sm:$0xf]
        %v499 = vld [vmem:[%s432 + $0x68] sm:$0xf]
        %v500 = vld [vmem:[%s432 + $0x6c] sm:$0xf]
        %v501 = vld [vmem:[%s432 + $0x70] sm:$0xf]
        %v502 = vld [vmem:[%s432 + $0x74] sm:$0xf]
        %v503 = vld [vmem:[%s432 + $0x78] sm:$0xf]
        %v504 = vld [vmem:[%s432 + $0x7c] sm:$0xf]
        %v505 = vld [vmem:[%s1] sm:$0xff]
        %v506 = vld [vmem:[%s1 + $0x8] sm:$0xff]
        %v507 = vld [vmem:[%s2] sm:$0xf]
        %v509 = vperm.slane %v507, 0
        %v510 = vperm.slane %v507, 1
        %v511 = vperm.slane %v507, 2
        %v512 = vperm.slane %v507, 3
        %v549 = vunpack.c.l.b16 %v473
        %v550 = vunpack.c.l.b16 %v474
        %v551 = vunpack.c.l.b16 %v475
        %v552 = vunpack.c.l.b16 %v476
        %v553 = vunpack.c.l.b16 %v477
        %v554 = vunpack.c.l.b16 %v478
        %v555 = vunpack.c.l.b16 %v479
        %v556 = vunpack.c.l.b16 %v480
        %v557 = vunpack.c.l.b16 %v481
        %v558 = vunpack.c.l.b16 %v482
        %v559 = vunpack.c.l.b16 %v483
        %v560 = vunpack.c.l.b16 %v484
        %v561 = vunpack.c.l.b16 %v485
        %v562 = vunpack.c.l.b16 %v486
        %v563 = vunpack.c.l.b16 %v487
        %v564 = vunpack.c.l.b16 %v488
        %v565 = vunpack.c.l.b16 %v489
        %v566 = vunpack.c.l.b16 %v490
        %v567 = vunpack.c.l.b16 %v491
        %v568 = vunpack.c.l.b16 %v492
        %v569 = vunpack.c.l.b16 %v493
        %v570 = vunpack.c.l.b16 %v494
        %v571 = vunpack.c.l.b16 %v495
        %v572 = vunpack.c.l.b16 %v496
        %v573 = vunpack.c.l.b16 %v497
        %v574 = vunpack.c.l.b16 %v498
        %v575 = vunpack.c.l.b16 %v499
        %v576 = vunpack.c.l.b16 %v500
        %v577 = vunpack.c.l.b16 %v501
        %v578 = vunpack.c.l.b16 %v502
        %v579 = vunpack.c.l.b16 %v503
        %v580 = vunpack.c.l.b16 %v504
        %v581 = vpack.c.b16 %v550, %v549
        %v582 = vpack.c.b16 %v552, %v551
        %v583 = vpack.c.b16 %v554, %v553
        %v584 = vpack.c.b16 %v556, %v555
        %v585 = vpack.c.b16 %v558, %v557
        %v586 = vpack.c.b16 %v560, %v559
        %v587 = vpack.c.b16 %v562, %v561
        %v588 = vpack.c.b16 %v564, %v563
        %v589 = vpack.c.b16 %v566, %v565
        %v590 = vpack.c.b16 %v568, %v567
        %v591 = vpack.c.b16 %v570, %v569
        %v592 = vpack.c.b16 %v572, %v571
        %v593 = vpack.c.b16 %v574, %v573
        %v594 = vpack.c.b16 %v576, %v575
        %v595 = vpack.c.b16 %v578, %v577
        %v596 = vpack.c.b16 %v580, %v579
        %v599 = vunpack.c.l.b16 %v505
        %v600 = vunpack.c.h.b16 %v505
        %v601 = vunpack.c.l.b16 %v506
        %v602 = vunpack.c.h.b16 %v506
        %v603 = vpack.c.b16 %v599, %v599
        %v604 = vpack.c.b16 %v600, %v600
        %v605 = vpack.c.b16 %v601, %v601
        %v606 = vpack.c.b16 %v602, %v602
        %vm607 = vcmask 64512
        %v609 = vsel %vm607, %v581, 0
        %v612 = vsel %vm607, %v582, 0
        %v615 = vsel %vm607, %v583, 0
        %v618 = vsel %vm607, %v584, 0
        %v621 = vsel %vm607, %v585, 0
        %v624 = vsel %vm607, %v586, 0
        %v627 = vsel %vm607, %v587, 0
        %v630 = vsel %vm607, %v588, 0
        %v633 = vsel %vm607, %v589, 0
        %v636 = vsel %vm607, %v590, 0
        %v639 = vsel %vm607, %v591, 0
        %v642 = vsel %vm607, %v592, 0
        %v645 = vsel %vm607, %v593, 0
        %v648 = vsel %vm607, %v594, 0
        %v651 = vsel %vm607, %v595, 0
        %v654 = vsel %vm607, %v596, 0
        %vm656 = vcmask 1043456
        %v658 = vsel %vm656, %v603, 0
        %v661 = vsel %vm656, %v604, 0
        %v664 = vsel %vm656, %v605, 0
        %v667 = vsel %vm656, %v606, 0
        %669 = vmatpush.bf16.msra.mxu0 0
        %670 = vmatpush.bf16.msra.mxu0 0
        %671 = vmatpush.bf16.msra.mxu0 0
        %672 = vmatpush.bf16.msra.mxu0 0
        %673 = vmatpush.bf16.msra.mxu0 0
        %674 = vmatpush.bf16.msra.mxu0 0
        %675 = vmatpush.bf16.msra.mxu0 0
        %676 = vmatpush.bf16.msra.mxu0 %v658
        %677 = vmatmul.bf16.gmra.mxu0 %v609
        %v678 = vpop.f32.mrf.mxu0
        %v679 = vadd.f32 %v509, %v678
        %v680 = vpop.f32.mrf.mxu0
        %v681 = vadd.f32 %v509, %v680
        %682 = vmatmul.bf16.gmra.mxu0 %v612
        %v683 = vpop.f32.mrf.mxu0
        %v684 = vadd.f32 %v509, %v683
        %v685 = vpop.f32.mrf.mxu0
        %v686 = vadd.f32 %v509, %v685
        %687 = vmatmul.bf16.gmra.mxu0 %v615
        %v688 = vpop.f32.mrf.mxu0
        %v689 = vadd.f32 %v509, %v688
        %v690 = vpop.f32.mrf.mxu0
        %v691 = vadd.f32 %v509, %v690
        %692 = vmatmul.bf16.gmra.mxu0 %v618
        %v693 = vpop.f32.mrf.mxu0
        %v694 = vadd.f32 %v509, %v693
        %v695 = vpop.f32.mrf.mxu0
        %v696 = vadd.f32 %v509, %v695
        %697 = vmatmul.bf16.gmra.mxu0 %v621
        %v698 = vpop.f32.mrf.mxu0
        %v699 = vadd.f32 %v509, %v698
        %v700 = vpop.f32.mrf.mxu0
        %v701 = vadd.f32 %v509, %v700
        %702 = vmatmul.bf16.gmra.mxu0 %v624
        %v703 = vpop.f32.mrf.mxu0
        %v704 = vadd.f32 %v509, %v703
        %v705 = vpop.f32.mrf.mxu0
        %v706 = vadd.f32 %v509, %v705
        %707 = vmatmul.bf16.gmra.mxu0 %v627
        %v708 = vpop.f32.mrf.mxu0
        %v709 = vadd.f32 %v509, %v708
        %v710 = vpop.f32.mrf.mxu0
        %v711 = vadd.f32 %v509, %v710
        %712 = vmatmul.bf16.gmra.mxu0 %v630
        %v713 = vpop.f32.mrf.mxu0
        %v714 = vadd.f32 %v509, %v713
        %v715 = vpop.f32.mrf.mxu0
        %v716 = vadd.f32 %v509, %v715
        %717 = vmatmul.bf16.gmra.mxu0 %v633
        %v718 = vpop.f32.mrf.mxu0
        %v719 = vadd.f32 %v509, %v718
        %v720 = vpop.f32.mrf.mxu0
        %v721 = vadd.f32 %v509, %v720
        %722 = vmatmul.bf16.gmra.mxu0 %v636
        %v723 = vpop.f32.mrf.mxu0
        %v724 = vadd.f32 %v509, %v723
        %v725 = vpop.f32.mrf.mxu0
        %v726 = vadd.f32 %v509, %v725
        %727 = vmatmul.bf16.gmra.mxu0 %v639
        %v728 = vpop.f32.mrf.mxu0
        %v729 = vadd.f32 %v509, %v728
        %v730 = vpop.f32.mrf.mxu0
        %v731 = vadd.f32 %v509, %v730
        %732 = vmatmul.bf16.gmra.mxu0 %v642
        %v733 = vpop.f32.mrf.mxu0
        %v734 = vadd.f32 %v509, %v733
        %v735 = vpop.f32.mrf.mxu0
        %v736 = vadd.f32 %v509, %v735
        %737 = vmatmul.bf16.gmra.mxu0 %v645
        %v738 = vpop.f32.mrf.mxu0
        %v739 = vadd.f32 %v509, %v738
        %v740 = vpop.f32.mrf.mxu0
        %v741 = vadd.f32 %v509, %v740
        %742 = vmatmul.bf16.gmra.mxu0 %v648
        %v743 = vpop.f32.mrf.mxu0
        %v744 = vadd.f32 %v509, %v743
        %v745 = vpop.f32.mrf.mxu0
        %v746 = vadd.f32 %v509, %v745
        %747 = vmatmul.bf16.gmra.mxu0 %v651
        %v748 = vpop.f32.mrf.mxu0
        %v749 = vadd.f32 %v509, %v748
        %v750 = vpop.f32.mrf.mxu0
        %v751 = vadd.f32 %v509, %v750
        %752 = vmatmul.bf16.gmra.mxu0 %v654
        %v753 = vpop.f32.mrf.mxu0
        %v754 = vadd.f32 %v509, %v753
        %v755 = vpop.f32.mrf.mxu0
        %v756 = vadd.f32 %v509, %v755
        %757 = vdwg.mxu0
        %758 = vmatpush.bf16.msra.mxu0 0
        %759 = vmatpush.bf16.msra.mxu0 0
        %760 = vmatpush.bf16.msra.mxu0 0
        %761 = vmatpush.bf16.msra.mxu0 0
        %762 = vmatpush.bf16.msra.mxu0 0
        %763 = vmatpush.bf16.msra.mxu0 0
        %764 = vmatpush.bf16.msra.mxu0 0
        %765 = vmatpush.bf16.msra.mxu0 %v661
        %766 = vmatmul.bf16.gmra.mxu0 %v609
        %v767 = vpop.f32.mrf.mxu0
        %v768 = vadd.f32 %v510, %v767
        %v769 = vpop.f32.mrf.mxu0
        %v770 = vadd.f32 %v510, %v769
        %771 = vmatmul.bf16.gmra.mxu0 %v612
        %v772 = vpop.f32.mrf.mxu0
        %v773 = vadd.f32 %v510, %v772
        %v774 = vpop.f32.mrf.mxu0
        %v775 = vadd.f32 %v510, %v774
        %776 = vmatmul.bf16.gmra.mxu0 %v615
        %v777 = vpop.f32.mrf.mxu0
        %v778 = vadd.f32 %v510, %v777
        %v779 = vpop.f32.mrf.mxu0
        %v780 = vadd.f32 %v510, %v779
        %781 = vmatmul.bf16.gmra.mxu0 %v618
        %v782 = vpop.f32.mrf.mxu0
        %v783 = vadd.f32 %v510, %v782
        %v784 = vpop.f32.mrf.mxu0
        %v785 = vadd.f32 %v510, %v784
        %786 = vmatmul.bf16.gmra.mxu0 %v621
        %v787 = vpop.f32.mrf.mxu0
        %v788 = vadd.f32 %v510, %v787
        %v789 = vpop.f32.mrf.mxu0
        %v790 = vadd.f32 %v510, %v789
        %791 = vmatmul.bf16.gmra.mxu0 %v624
        %v792 = vpop.f32.mrf.mxu0
        %v793 = vadd.f32 %v510, %v792
        %v794 = vpop.f32.mrf.mxu0
        %v795 = vadd.f32 %v510, %v794
        %796 = vmatmul.bf16.gmra.mxu0 %v627
        %v797 = vpop.f32.mrf.mxu0
        %v798 = vadd.f32 %v510, %v797
        %v799 = vpop.f32.mrf.mxu0
        %v800 = vadd.f32 %v510, %v799
        %801 = vmatmul.bf16.gmra.mxu0 %v630
        %v802 = vpop.f32.mrf.mxu0
        %v803 = vadd.f32 %v510, %v802
        %v804 = vpop.f32.mrf.mxu0
        %v805 = vadd.f32 %v510, %v804
        %806 = vmatmul.bf16.gmra.mxu0 %v633
        %v807 = vpop.f32.mrf.mxu0
        %v808 = vadd.f32 %v510, %v807
        %v809 = vpop.f32.mrf.mxu0
        %v810 = vadd.f32 %v510, %v809
        %811 = vmatmul.bf16.gmra.mxu0 %v636
        %v812 = vpop.f32.mrf.mxu0
        %v813 = vadd.f32 %v510, %v812
        %v814 = vpop.f32.mrf.mxu0
        %v815 = vadd.f32 %v510, %v814
        %816 = vmatmul.bf16.gmra.mxu0 %v639
        %v817 = vpop.f32.mrf.mxu0
        %v818 = vadd.f32 %v510, %v817
        %v819 = vpop.f32.mrf.mxu0
        %v820 = vadd.f32 %v510, %v819
        %821 = vmatmul.bf16.gmra.mxu0 %v642
        %v822 = vpop.f32.mrf.mxu0
        %v823 = vadd.f32 %v510, %v822
        %v824 = vpop.f32.mrf.mxu0
        %v825 = vadd.f32 %v510, %v824
        %826 = vmatmul.bf16.gmra.mxu0 %v645
        %v827 = vpop.f32.mrf.mxu0
        %v828 = vadd.f32 %v510, %v827
        %v829 = vpop.f32.mrf.mxu0
        %v830 = vadd.f32 %v510, %v829
        %831 = vmatmul.bf16.gmra.mxu0 %v648
        %v832 = vpop.f32.mrf.mxu0
        %v833 = vadd.f32 %v510, %v832
        %v834 = vpop.f32.mrf.mxu0
        %v835 = vadd.f32 %v510, %v834
        %836 = vmatmul.bf16.gmra.mxu0 %v651
        %v837 = vpop.f32.mrf.mxu0
        %v838 = vadd.f32 %v510, %v837
        %v839 = vpop.f32.mrf.mxu0
        %v840 = vadd.f32 %v510, %v839
        %841 = vmatmul.bf16.gmra.mxu0 %v654
        %v842 = vpop.f32.mrf.mxu0
        %v843 = vadd.f32 %v510, %v842
        %v844 = vpop.f32.mrf.mxu0
        %v845 = vadd.f32 %v510, %v844
        %846 = vdwg.mxu0
        %847 = vmatpush.bf16.msra.mxu0 0
        %848 = vmatpush.bf16.msra.mxu0 0
        %849 = vmatpush.bf16.msra.mxu0 0
        %850 = vmatpush.bf16.msra.mxu0 0
        %851 = vmatpush.bf16.msra.mxu0 0
        %852 = vmatpush.bf16.msra.mxu0 0
        %853 = vmatpush.bf16.msra.mxu0 0
        %854 = vmatpush.bf16.msra.mxu0 %v664
        %855 = vmatmul.bf16.gmra.mxu0 %v609
        %v856 = vpop.f32.mrf.mxu0
        %v857 = vadd.f32 %v511, %v856
        %v858 = vpop.f32.mrf.mxu0
        %v859 = vadd.f32 %v511, %v858
        %860 = vmatmul.bf16.gmra.mxu0 %v612
        %v861 = vpop.f32.mrf.mxu0
        %v862 = vadd.f32 %v511, %v861
        %v863 = vpop.f32.mrf.mxu0
        %v864 = vadd.f32 %v511, %v863
        %865 = vmatmul.bf16.gmra.mxu0 %v615
        %v866 = vpop.f32.mrf.mxu0
        %v867 = vadd.f32 %v511, %v866
        %v868 = vpop.f32.mrf.mxu0
        %v869 = vadd.f32 %v511, %v868
        %870 = vmatmul.bf16.gmra.mxu0 %v618
        %v871 = vpop.f32.mrf.mxu0
        %v872 = vadd.f32 %v511, %v871
        %v873 = vpop.f32.mrf.mxu0
        %v874 = vadd.f32 %v511, %v873
        %875 = vmatmul.bf16.gmra.mxu0 %v621
        %v876 = vpop.f32.mrf.mxu0
        %v877 = vadd.f32 %v511, %v876
        %v878 = vpop.f32.mrf.mxu0
        %v879 = vadd.f32 %v511, %v878
        %880 = vmatmul.bf16.gmra.mxu0 %v624
        %v881 = vpop.f32.mrf.mxu0
        %v882 = vadd.f32 %v511, %v881
        %v883 = vpop.f32.mrf.mxu0
        %v884 = vadd.f32 %v511, %v883
        %885 = vmatmul.bf16.gmra.mxu0 %v627
        %v886 = vpop.f32.mrf.mxu0
        %v887 = vadd.f32 %v511, %v886
        %v888 = vpop.f32.mrf.mxu0
        %v889 = vadd.f32 %v511, %v888
        %890 = vmatmul.bf16.gmra.mxu0 %v630
        %v891 = vpop.f32.mrf.mxu0
        %v892 = vadd.f32 %v511, %v891
        %v893 = vpop.f32.mrf.mxu0
        %v894 = vadd.f32 %v511, %v893
        %895 = vmatmul.bf16.gmra.mxu0 %v633
        %v896 = vpop.f32.mrf.mxu0
        %v897 = vadd.f32 %v511, %v896
        %v898 = vpop.f32.mrf.mxu0
        %v899 = vadd.f32 %v511, %v898
        %900 = vmatmul.bf16.gmra.mxu0 %v636
        %v901 = vpop.f32.mrf.mxu0
        %v902 = vadd.f32 %v511, %v901
        %v903 = vpop.f32.mrf.mxu0
        %v904 = vadd.f32 %v511, %v903
        %905 = vmatmul.bf16.gmra.mxu0 %v639
        %v906 = vpop.f32.mrf.mxu0
        %v907 = vadd.f32 %v511, %v906
        %v908 = vpop.f32.mrf.mxu0
        %v909 = vadd.f32 %v511, %v908
        %910 = vmatmul.bf16.gmra.mxu0 %v642
        %v911 = vpop.f32.mrf.mxu0
        %v912 = vadd.f32 %v511, %v911
        %v913 = vpop.f32.mrf.mxu0
        %v914 = vadd.f32 %v511, %v913
        %915 = vmatmul.bf16.gmra.mxu0 %v645
        %v916 = vpop.f32.mrf.mxu0
        %v917 = vadd.f32 %v511, %v916
        %v918 = vpop.f32.mrf.mxu0
        %v919 = vadd.f32 %v511, %v918
        %920 = vmatmul.bf16.gmra.mxu0 %v648
        %v921 = vpop.f32.mrf.mxu0
        %v922 = vadd.f32 %v511, %v921
        %v923 = vpop.f32.mrf.mxu0
        %v924 = vadd.f32 %v511, %v923
        %925 = vmatmul.bf16.gmra.mxu0 %v651
        %v926 = vpop.f32.mrf.mxu0
        %v927 = vadd.f32 %v511, %v926
        %v928 = vpop.f32.mrf.mxu0
        %v929 = vadd.f32 %v511, %v928
        %930 = vmatmul.bf16.gmra.mxu0 %v654
        %v931 = vpop.f32.mrf.mxu0
        %v932 = vadd.f32 %v511, %v931
        %v933 = vpop.f32.mrf.mxu0
        %v934 = vadd.f32 %v511, %v933
        %935 = vdwg.mxu0
        %936 = vmatpush.bf16.msra.mxu0 0
        %937 = vmatpush.bf16.msra.mxu0 0
        %938 = vmatpush.bf16.msra.mxu0 0
        %939 = vmatpush.bf16.msra.mxu0 0
        %940 = vmatpush.bf16.msra.mxu0 0
        %941 = vmatpush.bf16.msra.mxu0 0
        %942 = vmatpush.bf16.msra.mxu0 0
        %943 = vmatpush.bf16.msra.mxu0 %v667
        %944 = vmatmul.bf16.gmra.mxu0 %v609
        %v945 = vpop.f32.mrf.mxu0
        %v946 = vadd.f32 %v512, %v945
        %v947 = vpop.f32.mrf.mxu0
        %v948 = vadd.f32 %v512, %v947
        %949 = vmatmul.bf16.gmra.mxu0 %v612
        %v950 = vpop.f32.mrf.mxu0
        %v951 = vadd.f32 %v512, %v950
        %v952 = vpop.f32.mrf.mxu0
        %v953 = vadd.f32 %v512, %v952
        %954 = vmatmul.bf16.gmra.mxu0 %v615
        %v955 = vpop.f32.mrf.mxu0
        %v956 = vadd.f32 %v512, %v955
        %v957 = vpop.f32.mrf.mxu0
        %v958 = vadd.f32 %v512, %v957
        %959 = vmatmul.bf16.gmra.mxu0 %v618
        %v960 = vpop.f32.mrf.mxu0
        %v961 = vadd.f32 %v512, %v960
        %v962 = vpop.f32.mrf.mxu0
        %v963 = vadd.f32 %v512, %v962
        %964 = vmatmul.bf16.gmra.mxu0 %v621
        %v965 = vpop.f32.mrf.mxu0
        %v966 = vadd.f32 %v512, %v965
        %v967 = vpop.f32.mrf.mxu0
        %v968 = vadd.f32 %v512, %v967
        %969 = vmatmul.bf16.gmra.mxu0 %v624
        %v970 = vpop.f32.mrf.mxu0
        %v971 = vadd.f32 %v512, %v970
        %v972 = vpop.f32.mrf.mxu0
        %v973 = vadd.f32 %v512, %v972
        %974 = vmatmul.bf16.gmra.mxu0 %v627
        %v975 = vpop.f32.mrf.mxu0
        %v976 = vadd.f32 %v512, %v975
        %v977 = vpop.f32.mrf.mxu0
        %v978 = vadd.f32 %v512, %v977
        %979 = vmatmul.bf16.gmra.mxu0 %v630
        %v980 = vpop.f32.mrf.mxu0
        %v981 = vadd.f32 %v512, %v980
        %v982 = vpop.f32.mrf.mxu0
        %v983 = vadd.f32 %v512, %v982
        %984 = vmatmul.bf16.gmra.mxu0 %v633
        %v985 = vpop.f32.mrf.mxu0
        %v986 = vadd.f32 %v512, %v985
        %v987 = vpop.f32.mrf.mxu0
        %v988 = vadd.f32 %v512, %v987
        %989 = vmatmul.bf16.gmra.mxu0 %v636
        %v990 = vpop.f32.mrf.mxu0
        %v991 = vadd.f32 %v512, %v990
        %v992 = vpop.f32.mrf.mxu0
        %v993 = vadd.f32 %v512, %v992
        %994 = vmatmul.bf16.gmra.mxu0 %v639
        %v995 = vpop.f32.mrf.mxu0
        %v996 = vadd.f32 %v512, %v995
        %v997 = vpop.f32.mrf.mxu0
        %v998 = vadd.f32 %v512, %v997
        %999 = vmatmul.bf16.gmra.mxu0 %v642
        %v1000 = vpop.f32.mrf.mxu0
        %v1001 = vadd.f32 %v512, %v1000
        %v1002 = vpop.f32.mrf.mxu0
        %v1003 = vadd.f32 %v512, %v1002
        %1004 = vmatmul.bf16.gmra.mxu0 %v645
        %v1005 = vpop.f32.mrf.mxu0
        %v1006 = vadd.f32 %v512, %v1005
        %v1007 = vpop.f32.mrf.mxu0
        %v1008 = vadd.f32 %v512, %v1007
        %1009 = vmatmul.bf16.gmra.mxu0 %v648
        %v1010 = vpop.f32.mrf.mxu0
        %v1011 = vadd.f32 %v512, %v1010
        %v1012 = vpop.f32.mrf.mxu0
        %v1013 = vadd.f32 %v512, %v1012
        %1014 = vmatmul.bf16.gmra.mxu0 %v651
        %v1015 = vpop.f32.mrf.mxu0
        %v1016 = vadd.f32 %v512, %v1015
        %v1017 = vpop.f32.mrf.mxu0
        %v1018 = vadd.f32 %v512, %v1017
        %1019 = vmatmul.bf16.gmra.mxu0 %v654
        %v1020 = vpop.f32.mrf.mxu0
        %v1021 = vadd.f32 %v512, %v1020
        %v1022 = vpop.f32.mrf.mxu0
        %v1023 = vadd.f32 %v512, %v1022
        %1024 = vdwg.mxu0
        %v1025 = vmax.f32 %v679, 0.0
        %v1026 = vmax.f32 %v768, 0.0
        %v1027 = vmax.f32 %v857, 0.0
        %v1028 = vmax.f32 %v946, 0.0
        %v1029 = vmax.f32 %v681, 0.0
        %v1030 = vmax.f32 %v770, 0.0
        %v1031 = vmax.f32 %v859, 0.0
        %v1032 = vmax.f32 %v948, 0.0
        %v1033 = vmax.f32 %v684, 0.0
        %v1034 = vmax.f32 %v773, 0.0
        %v1035 = vmax.f32 %v862, 0.0
        %v1036 = vmax.f32 %v951, 0.0
        %v1037 = vmax.f32 %v686, 0.0
        %v1038 = vmax.f32 %v775, 0.0
        %v1039 = vmax.f32 %v864, 0.0
        %v1040 = vmax.f32 %v953, 0.0
        %v1041 = vmax.f32 %v689, 0.0
        %v1042 = vmax.f32 %v778, 0.0
        %v1043 = vmax.f32 %v867, 0.0
        %v1044 = vmax.f32 %v956, 0.0
        %v1045 = vmax.f32 %v691, 0.0
        %v1046 = vmax.f32 %v780, 0.0
        %v1047 = vmax.f32 %v869, 0.0
        %v1048 = vmax.f32 %v958, 0.0
        %v1049 = vmax.f32 %v694, 0.0
        %v1050 = vmax.f32 %v783, 0.0
        %v1051 = vmax.f32 %v872, 0.0
        %v1052 = vmax.f32 %v961, 0.0
        %v1053 = vmax.f32 %v696, 0.0
        %v1054 = vmax.f32 %v785, 0.0
        %v1055 = vmax.f32 %v874, 0.0
        %v1056 = vmax.f32 %v963, 0.0
        %v1057 = vmax.f32 %v699, 0.0
        %v1058 = vmax.f32 %v788, 0.0
        %v1059 = vmax.f32 %v877, 0.0
        %v1060 = vmax.f32 %v966, 0.0
        %v1061 = vmax.f32 %v701, 0.0
        %v1062 = vmax.f32 %v790, 0.0
        %v1063 = vmax.f32 %v879, 0.0
        %v1064 = vmax.f32 %v968, 0.0
        %v1065 = vmax.f32 %v704, 0.0
        %v1066 = vmax.f32 %v793, 0.0
        %v1067 = vmax.f32 %v882, 0.0
        %v1068 = vmax.f32 %v971, 0.0
        %v1069 = vmax.f32 %v706, 0.0
        %v1070 = vmax.f32 %v795, 0.0
        %v1071 = vmax.f32 %v884, 0.0
        %v1072 = vmax.f32 %v973, 0.0
        %v1073 = vmax.f32 %v709, 0.0
        %v1074 = vmax.f32 %v798, 0.0
        %v1075 = vmax.f32 %v887, 0.0
        %v1076 = vmax.f32 %v976, 0.0
        %v1077 = vmax.f32 %v711, 0.0
        %v1078 = vmax.f32 %v800, 0.0
        %v1079 = vmax.f32 %v889, 0.0
        %v1080 = vmax.f32 %v978, 0.0
        %v1081 = vmax.f32 %v714, 0.0
        %v1082 = vmax.f32 %v803, 0.0
        %v1083 = vmax.f32 %v892, 0.0
        %v1084 = vmax.f32 %v981, 0.0
        %v1085 = vmax.f32 %v716, 0.0
        %v1086 = vmax.f32 %v805, 0.0
        %v1087 = vmax.f32 %v894, 0.0
        %v1088 = vmax.f32 %v983, 0.0
        %v1089 = vmax.f32 %v719, 0.0
        %v1090 = vmax.f32 %v808, 0.0
        %v1091 = vmax.f32 %v897, 0.0
        %v1092 = vmax.f32 %v986, 0.0
        %v1093 = vmax.f32 %v721, 0.0
        %v1094 = vmax.f32 %v810, 0.0
        %v1095 = vmax.f32 %v899, 0.0
        %v1096 = vmax.f32 %v988, 0.0
        %v1097 = vmax.f32 %v724, 0.0
        %v1098 = vmax.f32 %v813, 0.0
        %v1099 = vmax.f32 %v902, 0.0
        %v1100 = vmax.f32 %v991, 0.0
        %v1101 = vmax.f32 %v726, 0.0
        %v1102 = vmax.f32 %v815, 0.0
        %v1103 = vmax.f32 %v904, 0.0
        %v1104 = vmax.f32 %v993, 0.0
        %v1105 = vmax.f32 %v729, 0.0
        %v1106 = vmax.f32 %v818, 0.0
        %v1107 = vmax.f32 %v907, 0.0
        %v1108 = vmax.f32 %v996, 0.0
        %v1109 = vmax.f32 %v731, 0.0
        %v1110 = vmax.f32 %v820, 0.0
        %v1111 = vmax.f32 %v909, 0.0
        %v1112 = vmax.f32 %v998, 0.0
        %v1113 = vmax.f32 %v734, 0.0
        %v1114 = vmax.f32 %v823, 0.0
        %v1115 = vmax.f32 %v912, 0.0
        %v1116 = vmax.f32 %v1001, 0.0
        %v1117 = vmax.f32 %v736, 0.0
        %v1118 = vmax.f32 %v825, 0.0
        %v1119 = vmax.f32 %v914, 0.0
        %v1120 = vmax.f32 %v1003, 0.0
        %v1121 = vmax.f32 %v739, 0.0
        %v1122 = vmax.f32 %v828, 0.0
        %v1123 = vmax.f32 %v917, 0.0
        %v1124 = vmax.f32 %v1006, 0.0
        %v1125 = vmax.f32 %v741, 0.0
        %v1126 = vmax.f32 %v830, 0.0
        %v1127 = vmax.f32 %v919, 0.0
        %v1128 = vmax.f32 %v1008, 0.0
        %v1129 = vmax.f32 %v744, 0.0
        %v1130 = vmax.f32 %v833, 0.0
        %v1131 = vmax.f32 %v922, 0.0
        %v1132 = vmax.f32 %v1011, 0.0
        %v1133 = vmax.f32 %v746, 0.0
        %v1134 = vmax.f32 %v835, 0.0
        %v1135 = vmax.f32 %v924, 0.0
        %v1136 = vmax.f32 %v1013, 0.0
        %v1137 = vmax.f32 %v749, 0.0
        %v1138 = vmax.f32 %v838, 0.0
        %v1139 = vmax.f32 %v927, 0.0
        %v1140 = vmax.f32 %v1016, 0.0
        %v1141 = vmax.f32 %v751, 0.0
        %v1142 = vmax.f32 %v840, 0.0
        %v1143 = vmax.f32 %v929, 0.0
        %v1144 = vmax.f32 %v1018, 0.0
        %v1145 = vmax.f32 %v754, 0.0
        %v1146 = vmax.f32 %v843, 0.0
        %v1147 = vmax.f32 %v932, 0.0
        %v1148 = vmax.f32 %v1021, 0.0
        %v1149 = vmax.f32 %v756, 0.0
        %v1150 = vmax.f32 %v845, 0.0
        %v1151 = vmax.f32 %v934, 0.0
        %v1152 = vmax.f32 %v1023, 0.0
        %v1153 = vld [vmem:[#allocation2] sm:$0xff]
        %v1154 = vld [vmem:[#allocation2 + $0x8] sm:$0xff]
        %v1155 = vadd.f32 %v1025, %v1029
        %v1156 = vadd.f32 %v1155, %v1033
        %v1157 = vadd.f32 %v1156, %v1037
        %v1158 = vadd.f32 %v1157, %v1041
        %v1159 = vadd.f32 %v1158, %v1045
        %v1160 = vadd.f32 %v1159, %v1049
        %v1161 = vadd.f32 %v1160, %v1053
        %v1162 = vrot.slane %v1161, 4
        %v1163 = vadd.f32 %v1161, %v1162
        %v1164 = vrot.slane %v1163, 2
        %v1165 = vadd.f32 %v1163, %v1164
        %v1166 = vrot.slane %v1165, 1
        %v1167 = vadd.f32 %v1165, %v1166
        %v1168 = vadd.f32 %v1026, %v1030
        %v1169 = vadd.f32 %v1168, %v1034
        %v1170 = vadd.f32 %v1169, %v1038
        %v1171 = vadd.f32 %v1170, %v1042
        %v1172 = vadd.f32 %v1171, %v1046
        %v1173 = vadd.f32 %v1172, %v1050
        %v1174 = vadd.f32 %v1173, %v1054
        %v1175 = vrot.slane %v1174, 4
        %v1176 = vadd.f32 %v1174, %v1175
        %v1177 = vrot.slane %v1176, 2
        %v1178 = vadd.f32 %v1176, %v1177
        %v1179 = vrot.slane %v1178, 1
        %v1180 = vadd.f32 %v1178, %v1179
        %v1181 = vadd.f32 %v1027, %v1031
        %v1182 = vadd.f32 %v1181, %v1035
        %v1183 = vadd.f32 %v1182, %v1039
        %v1184 = vadd.f32 %v1183, %v1043
        %v1185 = vadd.f32 %v1184, %v1047
        %v1186 = vadd.f32 %v1185, %v1051
        %v1187 = vadd.f32 %v1186, %v1055
        %v1188 = vrot.slane %v1187, 4
        %v1189 = vadd.f32 %v1187, %v1188
        %v1190 = vrot.slane %v1189, 2
        %v1191 = vadd.f32 %v1189, %v1190
        %v1192 = vrot.slane %v1191, 1
        %v1193 = vadd.f32 %v1191, %v1192
        %v1194 = vadd.f32 %v1028, %v1032
        %v1195 = vadd.f32 %v1194, %v1036
        %v1196 = vadd.f32 %v1195, %v1040
        %v1197 = vadd.f32 %v1196, %v1044
        %v1198 = vadd.f32 %v1197, %v1048
        %v1199 = vadd.f32 %v1198, %v1052
        %v1200 = vadd.f32 %v1199, %v1056
        %v1201 = vrot.slane %v1200, 4
        %v1202 = vadd.f32 %v1200, %v1201
        %v1203 = vrot.slane %v1202, 2
        %v1204 = vadd.f32 %v1202, %v1203
        %v1205 = vrot.slane %v1204, 1
        %v1206 = vadd.f32 %v1204, %v1205
        %v1207 = vadd.f32 %v1057, %v1061
        %v1208 = vadd.f32 %v1207, %v1065
        %v1209 = vadd.f32 %v1208, %v1069
        %v1210 = vadd.f32 %v1209, %v1073
        %v1211 = vadd.f32 %v1210, %v1077
        %v1212 = vadd.f32 %v1211, %v1081
        %v1213 = vadd.f32 %v1212, %v1085
        %v1214 = vrot.slane %v1213, 4
        %v1215 = vadd.f32 %v1213, %v1214
        %v1216 = vrot.slane %v1215, 2
        %v1217 = vadd.f32 %v1215, %v1216
        %v1218 = vrot.slane %v1217, 1
        %v1219 = vadd.f32 %v1217, %v1218
        %v1220 = vadd.f32 %v1058, %v1062
        %v1221 = vadd.f32 %v1220, %v1066
        %v1222 = vadd.f32 %v1221, %v1070
        %v1223 = vadd.f32 %v1222, %v1074
        %v1224 = vadd.f32 %v1223, %v1078
        %v1225 = vadd.f32 %v1224, %v1082
        %v1226 = vadd.f32 %v1225, %v1086
        %v1227 = vrot.slane %v1226, 4
        %v1228 = vadd.f32 %v1226, %v1227
        %v1229 = vrot.slane %v1228, 2
        %v1230 = vadd.f32 %v1228, %v1229
        %v1231 = vrot.slane %v1230, 1
        %v1232 = vadd.f32 %v1230, %v1231
        %v1233 = vadd.f32 %v1059, %v1063
        %v1234 = vadd.f32 %v1233, %v1067
        %v1235 = vadd.f32 %v1234, %v1071
        %v1236 = vadd.f32 %v1235, %v1075
        %v1237 = vadd.f32 %v1236, %v1079
        %v1238 = vadd.f32 %v1237, %v1083
        %v1239 = vadd.f32 %v1238, %v1087
        %v1240 = vrot.slane %v1239, 4
        %v1241 = vadd.f32 %v1239, %v1240
        %v1242 = vrot.slane %v1241, 2
        %v1243 = vadd.f32 %v1241, %v1242
        %v1244 = vrot.slane %v1243, 1
        %v1245 = vadd.f32 %v1243, %v1244
        %v1246 = vadd.f32 %v1060, %v1064
        %v1247 = vadd.f32 %v1246, %v1068
        %v1248 = vadd.f32 %v1247, %v1072
        %v1249 = vadd.f32 %v1248, %v1076
        %v1250 = vadd.f32 %v1249, %v1080
        %v1251 = vadd.f32 %v1250, %v1084
        %v1252 = vadd.f32 %v1251, %v1088
        %v1253 = vrot.slane %v1252, 4
        %v1254 = vadd.f32 %v1252, %v1253
        %v1255 = vrot.slane %v1254, 2
        %v1256 = vadd.f32 %v1254, %v1255
        %v1257 = vrot.slane %v1256, 1
        %v1258 = vadd.f32 %v1256, %v1257
        %v1259 = vadd.f32 %v1089, %v1093
        %v1260 = vadd.f32 %v1259, %v1097
        %v1261 = vadd.f32 %v1260, %v1101
        %v1262 = vadd.f32 %v1261, %v1105
        %v1263 = vadd.f32 %v1262, %v1109
        %v1264 = vadd.f32 %v1263, %v1113
        %v1265 = vadd.f32 %v1264, %v1117
        %v1266 = vrot.slane %v1265, 4
        %v1267 = vadd.f32 %v1265, %v1266
        %v1268 = vrot.slane %v1267, 2
        %v1269 = vadd.f32 %v1267, %v1268
        %v1270 = vrot.slane %v1269, 1
        %v1271 = vadd.f32 %v1269, %v1270
        %v1272 = vadd.f32 %v1090, %v1094
        %v1273 = vadd.f32 %v1272, %v1098
        %v1274 = vadd.f32 %v1273, %v1102
        %v1275 = vadd.f32 %v1274, %v1106
        %v1276 = vadd.f32 %v1275, %v1110
        %v1277 = vadd.f32 %v1276, %v1114
        %v1278 = vadd.f32 %v1277, %v1118
        %v1279 = vrot.slane %v1278, 4
        %v1280 = vadd.f32 %v1278, %v1279
        %v1281 = vrot.slane %v1280, 2
        %v1282 = vadd.f32 %v1280, %v1281
        %v1283 = vrot.slane %v1282, 1
        %v1284 = vadd.f32 %v1282, %v1283
        %v1285 = vadd.f32 %v1091, %v1095
        %v1286 = vadd.f32 %v1285, %v1099
        %v1287 = vadd.f32 %v1286, %v1103
        %v1288 = vadd.f32 %v1287, %v1107
        %v1289 = vadd.f32 %v1288, %v1111
        %v1290 = vadd.f32 %v1289, %v1115
        %v1291 = vadd.f32 %v1290, %v1119
        %v1292 = vrot.slane %v1291, 4
        %v1293 = vadd.f32 %v1291, %v1292
        %v1294 = vrot.slane %v1293, 2
        %v1295 = vadd.f32 %v1293, %v1294
        %v1296 = vrot.slane %v1295, 1
        %v1297 = vadd.f32 %v1295, %v1296
        %v1298 = vadd.f32 %v1092, %v1096
        %v1299 = vadd.f32 %v1298, %v1100
        %v1300 = vadd.f32 %v1299, %v1104
        %v1301 = vadd.f32 %v1300, %v1108
        %v1302 = vadd.f32 %v1301, %v1112
        %v1303 = vadd.f32 %v1302, %v1116
        %v1304 = vadd.f32 %v1303, %v1120
        %v1305 = vrot.slane %v1304, 4
        %v1306 = vadd.f32 %v1304, %v1305
        %v1307 = vrot.slane %v1306, 2
        %v1308 = vadd.f32 %v1306, %v1307
        %v1309 = vrot.slane %v1308, 1
        %v1310 = vadd.f32 %v1308, %v1309
        %v1311 = vadd.f32 %v1121, %v1125
        %v1312 = vadd.f32 %v1311, %v1129
        %v1313 = vadd.f32 %v1312, %v1133
        %v1314 = vadd.f32 %v1313, %v1137
        %v1315 = vadd.f32 %v1314, %v1141
        %v1316 = vadd.f32 %v1315, %v1145
        %v1317 = vadd.f32 %v1316, %v1149
        %v1318 = vrot.slane %v1317, 4
        %v1319 = vadd.f32 %v1317, %v1318
        %v1320 = vrot.slane %v1319, 2
        %v1321 = vadd.f32 %v1319, %v1320
        %v1322 = vrot.slane %v1321, 1
        %v1323 = vadd.f32 %v1321, %v1322
        %v1324 = vadd.f32 %v1122, %v1126
        %v1325 = vadd.f32 %v1324, %v1130
        %v1326 = vadd.f32 %v1325, %v1134
        %v1327 = vadd.f32 %v1326, %v1138
        %v1328 = vadd.f32 %v1327, %v1142
        %v1329 = vadd.f32 %v1328, %v1146
        %v1330 = vadd.f32 %v1329, %v1150
        %v1331 = vrot.slane %v1330, 4
        %v1332 = vadd.f32 %v1330, %v1331
        %v1333 = vrot.slane %v1332, 2
        %v1334 = vadd.f32 %v1332, %v1333
        %v1335 = vrot.slane %v1334, 1
        %v1336 = vadd.f32 %v1334, %v1335
        %v1337 = vadd.f32 %v1123, %v1127
        %v1338 = vadd.f32 %v1337, %v1131
        %v1339 = vadd.f32 %v1338, %v1135
        %v1340 = vadd.f32 %v1339, %v1139
        %v1341 = vadd.f32 %v1340, %v1143
        %v1342 = vadd.f32 %v1341, %v1147
        %v1343 = vadd.f32 %v1342, %v1151
        %v1344 = vrot.slane %v1343, 4
        %v1345 = vadd.f32 %v1343, %v1344
        %v1346 = vrot.slane %v1345, 2
        %v1347 = vadd.f32 %v1345, %v1346
        %v1348 = vrot.slane %v1347, 1
        %v1349 = vadd.f32 %v1347, %v1348
        %v1350 = vadd.f32 %v1124, %v1128
        %v1351 = vadd.f32 %v1350, %v1132
        %v1352 = vadd.f32 %v1351, %v1136
        %v1353 = vadd.f32 %v1352, %v1140
        %v1354 = vadd.f32 %v1353, %v1144
        %v1355 = vadd.f32 %v1354, %v1148
        %v1356 = vadd.f32 %v1355, %v1152
        %v1357 = vrot.slane %v1356, 4
        %v1358 = vadd.f32 %v1356, %v1357
        %v1359 = vrot.slane %v1358, 2
        %v1360 = vadd.f32 %v1358, %v1359
        %v1361 = vrot.slane %v1360, 1
        %v1362 = vadd.f32 %v1360, %v1361
        %v1379 = vrot.slane %v1180, 4
        %v1380 = vrot.slane %v1206, 4
        %v1381 = vrot.slane %v1232, 4
        %v1382 = vrot.slane %v1258, 4
        %v1383 = vrot.slane %v1284, 4
        %v1384 = vrot.slane %v1310, 4
        %v1385 = vrot.slane %v1336, 4
        %v1386 = vrot.slane %v1362, 4
        %v1387 = vsel %vm656, %v1167, %v1379
        %v1388 = vsel %vm656, %v1193, %v1380
        %v1389 = vsel %vm656, %v1219, %v1381
        %v1390 = vsel %vm656, %v1245, %v1382
        %v1391 = vsel %vm656, %v1271, %v1383
        %v1392 = vsel %vm656, %v1297, %v1384
        %v1393 = vsel %vm656, %v1323, %v1385
        %v1394 = vsel %vm656, %v1349, %v1386
        %v1395 = vrot.slane %v1389, 7
        %vm1396 = vcmask 1041409
        %v1397 = vsel %vm1396, %v1395, %v1387
        %vm1398 = vcmask 1045509
        %v1399 = vsel %vm1398, %v1395, %v1397
        %v1400 = vrot.slane %v1391, 6
        %vm1401 = vcmask 1042434
        %v1402 = vsel %vm1401, %v1400, %v1399
        %vm1403 = vcmask 1046534
        %v1404 = vsel %vm1403, %v1400, %v1402
        %v1405 = vrot.slane %v1393, 5
        %vm1406 = vcmask 1043459
        %v1407 = vsel %vm1406, %v1405, %v1404
        %vm1408 = vcmask 1047559
        %v1409 = vsel %vm1408, %v1405, %v1407
        %v1410 = vrot.slane %v1390, 7
        %v1411 = vsel %vm1396, %v1410, %v1388
        %v1412 = vsel %vm1398, %v1410, %v1411
        %v1413 = vrot.slane %v1392, 6
        %v1414 = vsel %vm1401, %v1413, %v1412
        %v1415 = vsel %vm1403, %v1413, %v1414
        %v1416 = vrot.slane %v1394, 5
        %v1417 = vsel %vm1406, %v1416, %v1415
        %v1418 = vsel %vm1408, %v1416, %v1417
        %v1421 = vadd.f32 %v1153, %v1409
        %v1422 = vadd.f32 %v1154, %v1418
        %1423 = vst [vmem:[#allocation2] sm:$0xff] %v1421
        %1424 = vst [vmem:[#allocation2 + $0x8] sm:$0xff] %v1422
        // Predicated region
        $region94: #{embedding_model_forward.1} parent=84 // pred_check
          %p1425 = pneg %p467
        $region95: #{embedding_model_forward.1} parent=84 // pred_check_branch
          %1427 = sbr.rel (%p1425) target = $region97
        $region96: #{embedding_model_forward.1} parent=84 // pred_region
          %v1428 = vld [vmem:[#allocation2] sm:$0xff]
          %v1429 = vld [vmem:[#allocation2 + $0x8] sm:$0xff]
          %v1430 = vmul.f32 %v1428, 0.015625
          %v1431 = vmul.f32 %v1429, 0.015625
          %1434 = vst [vmem:[#allocation1] ss:$2 sm:$0xff] %v1430
          %s1435 = scalar_lea.vmem [#allocation1], 16
          %1436 = vst [vmem:[%s1435] ss:$2 sm:$0xff] %v1431
          %v1437 = vld.sshfl [vmem:[#allocation1] sm:$0xff pattern:$0x75316420]
          %v1438 = vld.sshfl [vmem:[#allocation1 + $0x8] sm:$0xff pattern:$0x75316420]
          %v1439 = vld.sshfl [vmem:[#allocation1 + $0x10] sm:$0xff pattern:$0x75316420]
          %v1440 = vld.sshfl [vmem:[#allocation1 + $0x18] sm:$0xff pattern:$0x75316420]
          %v1445 = vpack.c.bf16 %v1437, %v1437
          %v1446 = vpack.c.bf16 %v1438, %v1438
          %v1447 = vpack.c.bf16 %v1439, %v1439
          %v1448 = vpack.c.bf16 %v1440, %v1440
          %v1449 = vld [vmem:[%s3] sm:$0xf]
          %v1450 = vld [vmem:[%s3 + $0x4] sm:$0xf]
          %v1451 = vld [vmem:[%s3 + $0x8] sm:$0xf]
          %v1452 = vld [vmem:[%s3 + $0xc] sm:$0xf]
          %v1453 = vld [vmem:[%s3 + $0x10] sm:$0xf]
          %v1454 = vld [vmem:[%s3 + $0x14] sm:$0xf]
          %v1455 = vld [vmem:[%s3 + $0x18] sm:$0xf]
          %v1456 = vld [vmem:[%s3 + $0x1c] sm:$0xf]
          %v1457 = vld [vmem:[%s3 + $0x20] sm:$0xf]
          %v1458 = vld [vmem:[%s3 + $0x24] sm:$0xf]
          %v1459 = vld [vmem:[%s3 + $0x28] sm:$0xf]
          %v1460 = vld [vmem:[%s3 + $0x2c] sm:$0xf]
          %v1461 = vld [vmem:[%s3 + $0x30] sm:$0xf]
          %v1462 = vld [vmem:[%s3 + $0x34] sm:$0xf]
          %v1463 = vld [vmem:[%s3 + $0x38] sm:$0xf]
          %v1464 = vld [vmem:[%s3 + $0x3c] sm:$0xf]
          %v1465 = vld [vmem:[%s3 + $0x40] sm:$0xf]
          %v1466 = vld [vmem:[%s3 + $0x44] sm:$0xf]
          %v1467 = vld [vmem:[%s3 + $0x48] sm:$0xf]
          %v1468 = vld [vmem:[%s3 + $0x4c] sm:$0xf]
          %v1469 = vld [vmem:[%s3 + $0x50] sm:$0xf]
          %v1470 = vld [vmem:[%s3 + $0x54] sm:$0xf]
          %v1471 = vld [vmem:[%s3 + $0x58] sm:$0xf]
          %v1472 = vld [vmem:[%s3 + $0x5c] sm:$0xf]
          %v1473 = vld [vmem:[%s3 + $0x60] sm:$0xf]
          %v1474 = vld [vmem:[%s3 + $0x64] sm:$0xf]
          %v1475 = vld [vmem:[%s3 + $0x68] sm:$0xf]
          %v1476 = vld [vmem:[%s3 + $0x6c] sm:$0xf]
          %v1477 = vld [vmem:[%s3 + $0x70] sm:$0xf]
          %v1478 = vld [vmem:[%s3 + $0x74] sm:$0xf]
          %v1479 = vld [vmem:[%s3 + $0x78] sm:$0xf]
          %v1480 = vld [vmem:[%s3 + $0x7c] sm:$0xf]
          %v1481 = vld [vmem:[%s3 + $0x80] sm:$0xf]
          %v1482 = vld [vmem:[%s3 + $0x84] sm:$0xf]
          %v1483 = vld [vmem:[%s3 + $0x88] sm:$0xf]
          %v1484 = vld [vmem:[%s3 + $0x8c] sm:$0xf]
          %v1485 = vld [vmem:[%s3 + $0x90] sm:$0xf]
          %v1486 = vld [vmem:[%s3 + $0x94] sm:$0xf]
          %v1487 = vld [vmem:[%s3 + $0x98] sm:$0xf]
          %v1488 = vld [vmem:[%s3 + $0x9c] sm:$0xf]
          %v1489 = vld [vmem:[%s3 + $0xa0] sm:$0xf]
          %v1490 = vld [vmem:[%s3 + $0xa4] sm:$0xf]
          %v1491 = vld [vmem:[%s3 + $0xa8] sm:$0xf]
          %v1492 = vld [vmem:[%s3 + $0xac] sm:$0xf]
          %v1493 = vld [vmem:[%s3 + $0xb0] sm:$0xf]
          %v1494 = vld [vmem:[%s3 + $0xb4] sm:$0xf]
          %v1495 = vld [vmem:[%s3 + $0xb8] sm:$0xf]
          %v1496 = vld [vmem:[%s3 + $0xbc] sm:$0xf]
          %v1497 = vld [vmem:[%s3 + $0xc0] sm:$0xf]
          %v1498 = vld [vmem:[%s3 + $0xc4] sm:$0xf]
          %v1499 = vld [vmem:[%s3 + $0xc8] sm:$0xf]
          %v1500 = vld [vmem:[%s3 + $0xcc] sm:$0xf]
          %v1501 = vld [vmem:[%s3 + $0xd0] sm:$0xf]
          %v1502 = vld [vmem:[%s3 + $0xd4] sm:$0xf]
          %v1503 = vld [vmem:[%s3 + $0xd8] sm:$0xf]
          %v1504 = vld [vmem:[%s3 + $0xdc] sm:$0xf]
          %v1505 = vld [vmem:[%s3 + $0xe0] sm:$0xf]
          %v1506 = vld [vmem:[%s3 + $0xe4] sm:$0xf]
          %v1507 = vld [vmem:[%s3 + $0xe8] sm:$0xf]
          %v1508 = vld [vmem:[%s3 + $0xec] sm:$0xf]
          %v1509 = vld [vmem:[%s3 + $0xf0] sm:$0xf]
          %v1510 = vld [vmem:[%s3 + $0xf4] sm:$0xf]
          %v1511 = vld [vmem:[%s3 + $0xf8] sm:$0xf]
          %v1512 = vld [vmem:[%s3 + $0xfc] sm:$0xf]
          %v1513 = vld [vmem:[%s4] sm:$0x1]
          %v1515 = vperm.slane %v1513, 0
          %v1581 = vunpack.c.l.b16 %v1449
          %v1582 = vunpack.c.l.b16 %v1450
          %v1583 = vunpack.c.l.b16 %v1451
          %v1584 = vunpack.c.l.b16 %v1452
          %v1585 = vunpack.c.l.b16 %v1453
          %v1586 = vunpack.c.l.b16 %v1454
          %v1587 = vunpack.c.l.b16 %v1455
          %v1588 = vunpack.c.l.b16 %v1456
          %v1589 = vunpack.c.l.b16 %v1457
          %v1590 = vunpack.c.l.b16 %v1458
          %v1591 = vunpack.c.l.b16 %v1459
          %v1592 = vunpack.c.l.b16 %v1460
          %v1593 = vunpack.c.l.b16 %v1461
          %v1594 = vunpack.c.l.b16 %v1462
          %v1595 = vunpack.c.l.b16 %v1463
          %v1596 = vunpack.c.l.b16 %v1464
          %v1597 = vunpack.c.l.b16 %v1465
          %v1598 = vunpack.c.l.b16 %v1466
          %v1599 = vunpack.c.l.b16 %v1467
          %v1600 = vunpack.c.l.b16 %v1468
          %v1601 = vunpack.c.l.b16 %v1469
          %v1602 = vunpack.c.l.b16 %v1470
          %v1603 = vunpack.c.l.b16 %v1471
          %v1604 = vunpack.c.l.b16 %v1472
          %v1605 = vunpack.c.l.b16 %v1473
          %v1606 = vunpack.c.l.b16 %v1474
          %v1607 = vunpack.c.l.b16 %v1475
          %v1608 = vunpack.c.l.b16 %v1476
          %v1609 = vunpack.c.l.b16 %v1477
          %v1610 = vunpack.c.l.b16 %v1478
          %v1611 = vunpack.c.l.b16 %v1479
          %v1612 = vunpack.c.l.b16 %v1480
          %v1613 = vunpack.c.l.b16 %v1481
          %v1614 = vunpack.c.l.b16 %v1482
          %v1615 = vunpack.c.l.b16 %v1483
          %v1616 = vunpack.c.l.b16 %v1484
          %v1617 = vunpack.c.l.b16 %v1485
          %v1618 = vunpack.c.l.b16 %v1486
          %v1619 = vunpack.c.l.b16 %v1487
          %v1620 = vunpack.c.l.b16 %v1488
          %v1621 = vunpack.c.l.b16 %v1489
          %v1622 = vunpack.c.l.b16 %v1490
          %v1623 = vunpack.c.l.b16 %v1491
          %v1624 = vunpack.c.l.b16 %v1492
          %v1625 = vunpack.c.l.b16 %v1493
          %v1626 = vunpack.c.l.b16 %v1494
          %v1627 = vunpack.c.l.b16 %v1495
          %v1628 = vunpack.c.l.b16 %v1496
          %v1629 = vunpack.c.l.b16 %v1497
          %v1630 = vunpack.c.l.b16 %v1498
          %v1631 = vunpack.c.l.b16 %v1499
          %v1632 = vunpack.c.l.b16 %v1500
          %v1633 = vunpack.c.l.b16 %v1501
          %v1634 = vunpack.c.l.b16 %v1502
          %v1635 = vunpack.c.l.b16 %v1503
          %v1636 = vunpack.c.l.b16 %v1504
          %v1637 = vunpack.c.l.b16 %v1505
          %v1638 = vunpack.c.l.b16 %v1506
          %v1639 = vunpack.c.l.b16 %v1507
          %v1640 = vunpack.c.l.b16 %v1508
          %v1641 = vunpack.c.l.b16 %v1509
          %v1642 = vunpack.c.l.b16 %v1510
          %v1643 = vunpack.c.l.b16 %v1511
          %v1644 = vunpack.c.l.b16 %v1512
          %v1645 = vpack.c.b16 %v1582, %v1581
          %v1646 = vpack.c.b16 %v1584, %v1583
          %v1647 = vpack.c.b16 %v1586, %v1585
          %v1648 = vpack.c.b16 %v1588, %v1587
          %v1649 = vpack.c.b16 %v1590, %v1589
          %v1650 = vpack.c.b16 %v1592, %v1591
          %v1651 = vpack.c.b16 %v1594, %v1593
          %v1652 = vpack.c.b16 %v1596, %v1595
          %v1653 = vpack.c.b16 %v1598, %v1597
          %v1654 = vpack.c.b16 %v1600, %v1599
          %v1655 = vpack.c.b16 %v1602, %v1601
          %v1656 = vpack.c.b16 %v1604, %v1603
          %v1657 = vpack.c.b16 %v1606, %v1605
          %v1658 = vpack.c.b16 %v1608, %v1607
          %v1659 = vpack.c.b16 %v1610, %v1609
          %v1660 = vpack.c.b16 %v1612, %v1611
          %v1661 = vpack.c.b16 %v1614, %v1613
          %v1662 = vpack.c.b16 %v1616, %v1615
          %v1663 = vpack.c.b16 %v1618, %v1617
          %v1664 = vpack.c.b16 %v1620, %v1619
          %v1665 = vpack.c.b16 %v1622, %v1621
          %v1666 = vpack.c.b16 %v1624, %v1623
          %v1667 = vpack.c.b16 %v1626, %v1625
          %v1668 = vpack.c.b16 %v1628, %v1627
          %v1669 = vpack.c.b16 %v1630, %v1629
          %v1670 = vpack.c.b16 %v1632, %v1631
          %v1671 = vpack.c.b16 %v1634, %v1633
          %v1672 = vpack.c.b16 %v1636, %v1635
          %v1673 = vpack.c.b16 %v1638, %v1637
          %v1674 = vpack.c.b16 %v1640, %v1639
          %v1675 = vpack.c.b16 %v1642, %v1641
          %v1676 = vpack.c.b16 %v1644, %v1643
          %1709 = vmatpush.bf16.msra.mxu0 %v1652
          %1710 = vmatpush.bf16.msra.mxu0 %v1651
          %1711 = vmatpush.bf16.msra.mxu0 %v1650
          %1712 = vmatpush.bf16.msra.mxu0 %v1649
          %1713 = vmatpush.bf16.msra.mxu0 %v1648
          %1714 = vmatpush.bf16.msra.mxu0 %v1647
          %1715 = vmatpush.bf16.msra.mxu0 %v1646
          %1716 = vmatpush.bf16.msra.mxu0 %v1645
          %1717 = vmatmul.bf16.gmra.mxu0 %v1445
          %v1718 = vpop.f32.mrf.mxu0
          %v1719 = vadd.f32 %v1515, %v1718
          %v1720 = vpop.f32.mrf.mxu0
          %1721 = vdwg.mxu0
          %1722 = vmatpush.bf16.msra.mxu0 %v1660
          %1723 = vmatpush.bf16.msra.mxu0 %v1659
          %1724 = vmatpush.bf16.msra.mxu0 %v1658
          %1725 = vmatpush.bf16.msra.mxu0 %v1657
          %1726 = vmatpush.bf16.msra.mxu0 %v1656
          %1727 = vmatpush.bf16.msra.mxu0 %v1655
          %1728 = vmatpush.bf16.msra.mxu0 %v1654
          %1729 = vmatpush.bf16.msra.mxu0 %v1653
          %1730 = vmatmul.bf16.gmra.mxu0 %v1446
          %v1731 = vpop.f32.mrf.mxu0
          %v1732 = vadd.f32 %v1719, %v1731
          %v1733 = vpop.f32.mrf.mxu0
          %1734 = vdwg.mxu0
          %1735 = vmatpush.bf16.msra.mxu0 %v1668
          %1736 = vmatpush.bf16.msra.mxu0 %v1667
          %1737 = vmatpush.bf16.msra.mxu0 %v1666
          %1738 = vmatpush.bf16.msra.mxu0 %v1665
          %1739 = vmatpush.bf16.msra.mxu0 %v1664
          %1740 = vmatpush.bf16.msra.mxu0 %v1663
          %1741 = vmatpush.bf16.msra.mxu0 %v1662
          %1742 = vmatpush.bf16.msra.mxu0 %v1661
          %1743 = vmatmul.bf16.gmra.mxu0 %v1447
          %v1744 = vpop.f32.mrf.mxu0
          %v1745 = vadd.f32 %v1732, %v1744
          %v1746 = vpop.f32.mrf.mxu0
          %1747 = vdwg.mxu0
          %1748 = vmatpush.bf16.msra.mxu0 %v1676
          %1749 = vmatpush.bf16.msra.mxu0 %v1675
          %1750 = vmatpush.bf16.msra.mxu0 %v1674
          %1751 = vmatpush.bf16.msra.mxu0 %v1673
          %1752 = vmatpush.bf16.msra.mxu0 %v1672
          %1753 = vmatpush.bf16.msra.mxu0 %v1671
          %1754 = vmatpush.bf16.msra.mxu0 %v1670
          %1755 = vmatpush.bf16.msra.mxu0 %v1669
          %1756 = vmatmul.bf16.gmra.mxu0 %v1448
          %v1757 = vpop.f32.mrf.mxu0
          %v1758 = vadd.f32 %v1745, %v1757
          %v1759 = vpop.f32.mrf.mxu0
          %1760 = vdwg.mxu0
          %v1762 = vrot.slane %v1758, 2
          %v1764 = vmul.f32 %v1758, %v1762
          %vm1765 = vcmask 517120
          %v1766 = vsel %vm1765, %v1764, 0.0
          %1767 = vadd.xlane.f32.xlu0 %v1766
          %v1768 = vpop.xlane.xlu0 %1767
          %s1769 = sld [smem:[#allocation3]]
          %v1770 = vstv %s1769
          %v1771 = vmul.f32 %v1768, %v1770
          %s1772 = sld [smem:[#allocation4]]
          %v1773 = vstv %s1772
          %v1774 = vadd.f32 %v1771, %v1773
          %vm1775 = vcmask 7168
          %v1776 = vsel %vm1775, %v1774, 0.0
          %1777 = vst [vmem:[%s465] sm:$0x3] %v1776
        $region97: #{embedding_model_forward.1} parent=84 // pred_fallthru
          _
        %p1778 = scmp.lt.s32.totalorder %s24, 1
        %s1779 = scalar_select %p1778, %s24, 1
        %s1780 = smul.addr %s1779, 2
        %s1781 = scalar_lea.vmem %s7, %s1780
        // Predicated region
        $region98: #{embedding_model_forward.1} parent=84 // pred_check
          %p1782 = pneg %p204
        $region99: #{embedding_model_forward.1} parent=84 // pred_check_branch
          %1784 = sbr.rel (%p1782) target = $region101
        $region100: #{embedding_model_forward.1} parent=84 // pred_region
          _
        $region101: #{embedding_model_forward.1} parent=84 // pred_fallthru
          _
      $region85: #{embedding_model_forward.1} parent=5 // pred_fallthru
        _
      %p1785 = scmp.le.s32.totalorder 2, %s15
      // Predicated region
      $region102: #{embedding_model_forward.1} parent=5 // pred_check
        %p1786 = pneg %p1785
      $region103: #{embedding_model_forward.1} parent=5 // pred_check_branch
        %1788 = sbr.rel (%p1786) target = $region105
      $region104: #{embedding_model_forward.1} parent=5 // pred_region
        %s1789 = ssub.s32 %s15, 2
        // Predicated region
        $region106: #{embedding_model_forward.1} parent=104 // pred_check
          %p1790 = pneg %p210
        $region107: #{embedding_model_forward.1} parent=104 // pred_check_branch
          %1792 = sbr.rel (%p1790) target = $region109
        $region108: #{embedding_model_forward.1} parent=104 // pred_region
          %p1793 = scmp.lt.s32.totalorder %s26, 1
          %s1794 = scalar_select %p1793, %s26, 1
          %s1795 = smul.addr %s1794, 2
          %s1796 = scalar_lea.vmem %s7, %s1795
        $region109: #{embedding_model_forward.1} parent=104 // pred_fallthru
          _
      $region105: #{embedding_model_forward.1} parent=5 // pred_fallthru
        _
    $region6: #{embedding_model_forward.1} parent=1 // loop_footer
      %s19 = sadd.s32 1, %s15
    $region7: #{embedding_model_forward.1} parent=1 // loop_footer_branch
      %14 = sbr.rel target = $region3
    $region8: #{embedding_model_forward.1} parent=1 // loop_exit
      _

</llo_original>
